<compile_context>
chip_gen: v7x
topology: tpu7x:2x2x1
jax: 0.10.0
libtpu: 0.0.40
codegen_flags: <defaults>
</compile_context>

<pallas_src>
import math
import functools

import jax
import jax.numpy as jnp
import numpy as np
from jax import lax
from jax.experimental import pallas as pl
from jax.experimental.pallas import tpu as pltpu


def _mha_kernel(q_ref, k_ref, v_ref, bias_ref,
                wq_ref, wk_ref, wv_ref, wd_ref, bqkv_ref, bd_ref,
                out_ref, *, num_heads, d_k, d_model, seq_len,
                compute_dtype, approx_recip):
    cdt = compute_dtype
    f32 = jnp.float32
    S, D, H = seq_len, d_model, num_heads

    # One batch element per grid step (blocks are (1, S, D)).
    xq = q_ref[0]                       # (S, D), compute dtype
    xk = k_ref[0]
    xv = v_ref[0]
    b_qkv = bqkv_ref[...]               # (3, H, d_k) f32 (q-bias already scaled)

    # Contract last dims of both operands: q @ k^T with no XLU transpose.
    nt = (((1,), (1,)), ((), ()))

    v_heads = []
    score_blocks = []
    for h in range(H):                  # H=4: short fixed unroll
        # Head-major weights: wq_ref[h] is a zero-cost leading-dim index.
        qh = (jnp.dot(xq, wq_ref[h], preferred_element_type=f32)
              + b_qkv[0, h:h + 1, :])                       # (S, d_k) f32
        kh = (jnp.dot(xk, wk_ref[h], preferred_element_type=f32)
              + b_qkv[1, h:h + 1, :])
        vh = (jnp.dot(xv, wv_ref[h], preferred_element_type=f32)
              + b_qkv[2, h:h + 1, :])
        v_heads.append(vh.astype(cdt))
        # QK^T in f32 (scale already folded into Wq/bq in the wrapper).
        score_blocks.append(
            lax.dot_general(qh, kh, nt, preferred_element_type=f32))  # (S, S)

    # ---- One softmax across all heads: (H*S, S) slab along sublanes. ----
    scores = jnp.concatenate(score_blocks, axis=0)          # (H*S, S) f32
    scores = scores + bias_ref[0]                           # (1, S) mask bias
    scores = scores - jnp.max(scores, axis=-1, keepdims=True)
    e = jnp.exp(scores)
    denom = jnp.sum(e, axis=-1, keepdims=True)
    if approx_recip:
        attn = e * pl.reciprocal(denom, approx=True)
    else:
        attn = e / denom
    attn = attn.astype(cdt)

    # ---- Context + output projection accumulated per head into (S, D). ----
    acc = jnp.zeros((S, D), f32)
    for h in range(H):
        ctx = jnp.dot(attn[h * S:(h + 1) * S, :], v_heads[h],
                      preferred_element_type=f32)           # (S, d_k)
        acc = acc + jnp.dot(ctx.astype(cdt), wd_ref[h],
                            preferred_element_type=f32)     # (S, D)

    out_ref[0] = (acc + bd_ref[...]).astype(out_ref.dtype)


def multi_headed_attention(query, key, value, mask, params, *, num_heads,
                           compute_dtype=jnp.float32, approx_recip=True):
    """params: dict with wq,bq,wk,bk,wv,bv,wd,bd (torch Linear layout (out,in))."""
    B, S, D = query.shape
    assert D % num_heads == 0
    H = num_heads
    d_k = D // H
    scale = 1.0 / math.sqrt(d_k)
    f32 = jnp.float32

    # ---- Weight prep (wrapper): head-major, scale folded, compute dtype. ----
    def head_major(w_t):                       # (D, D) in->out  ->  (H, D, d_k)
        return w_t.reshape(D, H, d_k).transpose(1, 0, 2)

    wq_h = head_major(params["wq"].T * scale).astype(compute_dtype)
    wk_h = head_major(params["wk"].T).astype(compute_dtype)
    wv_h = head_major(params["wv"].T).astype(compute_dtype)
    wd_h = params["wd"].T.reshape(H, d_k, D).astype(compute_dtype)

    b_qkv = jnp.stack([
        (params["bq"] * scale).reshape(H, d_k),
        params["bk"].reshape(H, d_k),
        params["bv"].reshape(H, d_k),
    ], axis=0).astype(f32)                                   # (3, H, d_k)
    bd = params["bd"].reshape(1, D).astype(f32)

    # Additive mask bias precomputed here (no in-kernel compare/select).
    mask_bias = jnp.where(mask == 0, f32(-1e9), f32(0.0)).reshape(B, 1, S)

    q = query.astype(compute_dtype)
    k = key.astype(compute_dtype)
    v = value.astype(compute_dtype)

    kernel = functools.partial(
        _mha_kernel, num_heads=H, d_k=d_k, d_model=D, seq_len=S,
        compute_dtype=compute_dtype, approx_recip=approx_recip)

    # ---- Specs: activations/mask/out blocked per batch; weights resident. ----
    act_spec = pl.BlockSpec((1, S, D), lambda b: (b, 0, 0))
    bias_spec = pl.BlockSpec((1, 1, S), lambda b: (b, 0, 0))

    def const_spec(shape):
        n = len(shape)
        return pl.BlockSpec(shape, lambda b, _n=n: (0,) * _n)

    in_specs = [act_spec, act_spec, act_spec, bias_spec,
                const_spec(wq_h.shape), const_spec(wk_h.shape),
                const_spec(wv_h.shape), const_spec(wd_h.shape),
                const_spec(b_qkv.shape), const_spec(bd.shape)]
    out_spec = pl.BlockSpec((1, S, D), lambda b: (b, 0, 0))

    # ---- Cost estimate + VMEM budget sized to the actual working set. ----
    flops = 8 * B * S * D * D + 4 * B * H * S * S * d_k
    transcendentals = B * H * S * S
    operands = (q, k, v, mask_bias, wq_h, wk_h, wv_h, wd_h, b_qkv, bd)
    io_bytes = sum(int(np.prod(a.shape)) * a.dtype.itemsize for a in operands)
    io_bytes += B * S * D * 4                                # f32 output
    vmem_limit = int(2 * io_bytes + (4 << 20))               # dbl-buffer + slack

    out = pl.pallas_call(
        kernel,
        out_shape=jax.ShapeDtypeStruct((B, S, D), jnp.float32),
        grid=(B,),
        in_specs=in_specs,
        out_specs=out_spec,
        compiler_params=pltpu.CompilerParams(
            dimension_semantics=("parallel",),
            vmem_limit_bytes=vmem_limit),
        cost_estimate=pl.CostEstimate(flops=flops,
                                      transcendentals=transcendentals,
                                      bytes_accessed=io_bytes),
    )(q, k, v, mask_bias, wq_h, wk_h, wv_h, wd_h, b_qkv, bd)

    return out


def _reference(query, key, value, mask, params, *, num_heads):
    """Pure-JAX reference mirroring the torch forward (eval mode)."""
    B, S, D = query.shape
    d_k = D // num_heads

    def lin(x, w, b):
        return x @ w.T + b

    q = lin(query, params["wq"], params["bq"])
    k = lin(key, params["wk"], params["bk"])
    v = lin(value, params["wv"], params["bv"])

    def split(x):
        return x.reshape(B, S, num_heads, d_k).transpose(0, 2, 1, 3)  # (B,h,S,dk)

    q, k, v = split(q), split(k), split(v)
    scores = jnp.einsum("bhsd,bhtd->bhst", q, k) / math.sqrt(d_k)
    scores = jnp.where(mask[:, None, None, :] == 0, -1e9, scores)
    w = jax.nn.softmax(scores, axis=-1)
    out = jnp.einsum("bhst,bhtd->bhsd", w, v)
    out = out.transpose(0, 2, 1, 3).reshape(B, S, D)
    return lin(out, params["wd"], params["bd"])


if __name__ == "__main__":
    B, S, D, H = 2, 8, 32, 4

    root = jax.random.PRNGKey(0)
    keys = jax.random.split(root, 12)

    def winit(k):
        return jax.random.normal(k, (D, D), jnp.float32) * 0.05

    params = {
        "wq": winit(keys[0]), "bq": jax.random.normal(keys[1], (D,), jnp.float32) * 0.01,
        "wk": winit(keys[2]), "bk": jax.random.normal(keys[3], (D,), jnp.float32) * 0.01,
        "wv": winit(keys[4]), "bv": jax.random.normal(keys[5], (D,), jnp.float32) * 0.01,
        "wd": winit(keys[6]), "bd": jax.random.normal(keys[7], (D,), jnp.float32) * 0.01,
    }

    query = jax.random.normal(keys[8], (B, S, D), jnp.float32)
    key_ = jax.random.normal(keys[9], (B, S, D), jnp.float32)
    value = jax.random.normal(keys[10], (B, S, D), jnp.float32)

    # mask: 1 = attend, 0 = masked out (last 2 positions of batch 1 masked).
    mask = jnp.ones((B, S), jnp.int32).at[1, -2:].set(0)

    ref = _reference(query, key_, value, mask, params, num_heads=H)

    # f32 matmul path (tolerance accounts for approx reciprocal, ~2^-12 rel).
    out = multi_headed_attention(query, key_, value, mask, params, num_heads=H)
    out = jax.block_until_ready(out)
    np.testing.assert_allclose(np.asarray(out), np.asarray(ref), rtol=1e-3, atol=1e-3)

    # bf16 matmul-operand path (f32 accumulation, QK^T kept in f32).
    out_bf16 = multi_headed_attention(query, key_, value, mask, params,
                                      num_heads=H, compute_dtype=jnp.bfloat16)
    out_bf16 = jax.block_until_ready(out_bf16)
    np.testing.assert_allclose(np.asarray(out_bf16), np.asarray(ref),
                               rtol=5e-2, atol=5e-2)

    print("KERNEL_OK")
</pallas_src>

<mosaic_0001>
module attributes {stable_mosaic.version = 11 : i64} {
  func.func @_mha_kernel(%arg0: i32, %arg1: memref<1x8x32xf32, #tpu.memory_space<vmem>>, %arg2: memref<1x8x32xf32, #tpu.memory_space<vmem>>, %arg3: memref<1x8x32xf32, #tpu.memory_space<vmem>>, %arg4: memref<1x1x8xf32, #tpu.memory_space<vmem>>, %arg5: memref<4x32x8xf32, #tpu.memory_space<vmem>>, %arg6: memref<4x32x8xf32, #tpu.memory_space<vmem>>, %arg7: memref<4x32x8xf32, #tpu.memory_space<vmem>>, %arg8: memref<4x8x32xf32, #tpu.memory_space<vmem>>, %arg9: memref<3x4x8xf32, #tpu.memory_space<vmem>>, %arg10: memref<1x32xf32, #tpu.memory_space<vmem>>, %arg11: memref<1x8x32xf32, #tpu.memory_space<vmem>>) attributes {dimension_semantics = [#tpu.dimension_semantics<parallel>], iteration_bounds = array<i64: 2>, scalar_prefetch = 0 : i64, scratch_operands = 0 : i64, tpu.core_type = #tpu.core_type<tc>, window_params = [{transform_indices = @transform_0, window_bounds = array<i64: 1, 8, 32>}, {transform_indices = @transform_1, window_bounds = array<i64: 1, 8, 32>}, {transform_indices = @transform_2, window_bounds = array<i64: 1, 8, 32>}, {transform_indices = @transform_3, window_bounds = array<i64: 1, 1, 8>}, {pipeline_mode = #tpu.pipeline_mode<synchronous>, transform_indices = @transform_4, window_bounds = array<i64: 4, 32, 8>}, {pipeline_mode = #tpu.pipeline_mode<synchronous>, transform_indices = @transform_5, window_bounds = array<i64: 4, 32, 8>}, {pipeline_mode = #tpu.pipeline_mode<synchronous>, transform_indices = @transform_6, window_bounds = array<i64: 4, 32, 8>}, {pipeline_mode = #tpu.pipeline_mode<synchronous>, transform_indices = @transform_7, window_bounds = array<i64: 4, 8, 32>}, {pipeline_mode = #tpu.pipeline_mode<synchronous>, transform_indices = @transform_8, window_bounds = array<i64: 3, 4, 8>}, {pipeline_mode = #tpu.pipeline_mode<synchronous>, transform_indices = @transform_9, window_bounds = array<i64: 1, 32>}, {transform_indices = @transform_10, window_bounds = array<i64: 1, 8, 32>}]} {
    %c0 = arith.constant 0 : index
    %c0_0 = arith.constant 0 : index
    %c0_1 = arith.constant 0 : index
    %0 = vector.load %arg1[%c0, %c0_0, %c0_1] : memref<1x8x32xf32, #tpu.memory_space<vmem>>, vector<1x8x32xf32>
    %1 = vector.shape_cast %0 : vector<1x8x32xf32> to vector<8x32xf32>
    %c0_2 = arith.constant 0 : index
    %c0_3 = arith.constant 0 : index
    %c0_4 = arith.constant 0 : index
    %2 = vector.load %arg2[%c0_2, %c0_3, %c0_4] : memref<1x8x32xf32, #tpu.memory_space<vmem>>, vector<1x8x32xf32>
    %3 = vector.shape_cast %2 : vector<1x8x32xf32> to vector<8x32xf32>
    %c0_5 = arith.constant 0 : index
    %c0_6 = arith.constant 0 : index
    %c0_7 = arith.constant 0 : index
    %4 = vector.load %arg3[%c0_5, %c0_6, %c0_7] : memref<1x8x32xf32, #tpu.memory_space<vmem>>, vector<1x8x32xf32>
    %5 = vector.shape_cast %4 : vector<1x8x32xf32> to vector<8x32xf32>
    %c0_8 = arith.constant 0 : index
    %c0_9 = arith.constant 0 : index
    %c0_10 = arith.constant 0 : index
    %6 = vector.load %arg9[%c0_8, %c0_9, %c0_10] : memref<3x4x8xf32, #tpu.memory_space<vmem>>, vector<3x4x8xf32>
    %c0_11 = arith.constant 0 : index
    %c0_12 = arith.constant 0 : index
    %c0_13 = arith.constant 0 : index
    %7 = vector.load %arg5[%c0_11, %c0_12, %c0_13] : memref<4x32x8xf32, #tpu.memory_space<vmem>>, vector<1x32x8xf32>
    %8 = vector.shape_cast %7 : vector<1x32x8xf32> to vector<32x8xf32>
    %cst = arith.constant dense<0.000000e+00> : vector<8x8xf32>
    %9 = tpu.matmul %1, %8, %cst {dimension_numbers = #tpu.dot_dimension_numbers<[1], [0], [0], [1], [0, 0, 1, 1], [], []>} : vector<8x32xf32>, vector<32x8xf32>, vector<8x8xf32> -> vector<8x8xf32>
    %10 = vector.extract_strided_slice %6 {offsets = [0, 0, 0], sizes = [1, 1, 8], strides = [1, 1, 1]} : vector<3x4x8xf32> to vector<1x1x8xf32>
    %11 = vector.shape_cast %10 : vector<1x1x8xf32> to vector<1x8xf32>
    %12 = vector.broadcast %11 : vector<1x8xf32> to vector<8x8xf32>
    %13 = arith.addf %9, %12 : vector<8x8xf32>
    %c0_14 = arith.constant 0 : index
    %c0_15 = arith.constant 0 : index
    %c0_16 = arith.constant 0 : index
    %14 = vector.load %arg6[%c0_14, %c0_15, %c0_16] : memref<4x32x8xf32, #tpu.memory_space<vmem>>, vector<1x32x8xf32>
    %15 = vector.shape_cast %14 : vector<1x32x8xf32> to vector<32x8xf32>
    %cst_17 = arith.constant dense<0.000000e+00> : vector<8x8xf32>
    %16 = tpu.matmul %3, %15, %cst_17 {dimension_numbers = #tpu.dot_dimension_numbers<[1], [0], [0], [1], [0, 0, 1, 1], [], []>} : vector<8x32xf32>, vector<32x8xf32>, vector<8x8xf32> -> vector<8x8xf32>
    %17 = vector.extract_strided_slice %6 {offsets = [1, 0, 0], sizes = [1, 1, 8], strides = [1, 1, 1]} : vector<3x4x8xf32> to vector<1x1x8xf32>
    %18 = vector.shape_cast %17 : vector<1x1x8xf32> to vector<1x8xf32>
    %19 = vector.broadcast %18 : vector<1x8xf32> to vector<8x8xf32>
    %20 = arith.addf %16, %19 : vector<8x8xf32>
    %c0_18 = arith.constant 0 : index
    %c0_19 = arith.constant 0 : index
    %c0_20 = arith.constant 0 : index
    %21 = vector.load %arg7[%c0_18, %c0_19, %c0_20] : memref<4x32x8xf32, #tpu.memory_space<vmem>>, vector<1x32x8xf32>
    %22 = vector.shape_cast %21 : vector<1x32x8xf32> to vector<32x8xf32>
    %cst_21 = arith.constant dense<0.000000e+00> : vector<8x8xf32>
    %23 = tpu.matmul %5, %22, %cst_21 {dimension_numbers = #tpu.dot_dimension_numbers<[1], [0], [0], [1], [0, 0, 1, 1], [], []>} : vector<8x32xf32>, vector<32x8xf32>, vector<8x8xf32> -> vector<8x8xf32>
    %24 = vector.extract_strided_slice %6 {offsets = [2, 0, 0], sizes = [1, 1, 8], strides = [1, 1, 1]} : vector<3x4x8xf32> to vector<1x1x8xf32>
    %25 = vector.shape_cast %24 : vector<1x1x8xf32> to vector<1x8xf32>
    %26 = vector.broadcast %25 : vector<1x8xf32> to vector<8x8xf32>
    %27 = arith.addf %23, %26 : vector<8x8xf32>
    %cst_22 = arith.constant dense<0.000000e+00> : vector<8x8xf32>
    %28 = tpu.matmul %13, %20, %cst_22 {dimension_numbers = #tpu.dot_dimension_numbers<[1], [1], [0], [0], [0, 0, 1, 0], [], []>} : vector<8x8xf32>, vector<8x8xf32>, vector<8x8xf32> -> vector<8x8xf32>
    %c1 = arith.constant 1 : index
    %c0_23 = arith.constant 0 : index
    %c0_24 = arith.constant 0 : index
    %29 = vector.load %arg5[%c1, %c0_23, %c0_24] : memref<4x32x8xf32, #tpu.memory_space<vmem>>, vector<1x32x8xf32>
    %30 = vector.shape_cast %29 : vector<1x32x8xf32> to vector<32x8xf32>
    %cst_25 = arith.constant dense<0.000000e+00> : vector<8x8xf32>
    %31 = tpu.matmul %1, %30, %cst_25 {dimension_numbers = #tpu.dot_dimension_numbers<[1], [0], [0], [1], [0, 0, 1, 1], [], []>} : vector<8x32xf32>, vector<32x8xf32>, vector<8x8xf32> -> vector<8x8xf32>
    %32 = vector.extract_strided_slice %6 {offsets = [0, 1, 0], sizes = [1, 1, 8], strides = [1, 1, 1]} : vector<3x4x8xf32> to vector<1x1x8xf32>
    %33 = vector.shape_cast %32 : vector<1x1x8xf32> to vector<1x8xf32>
    %34 = vector.broadcast %33 : vector<1x8xf32> to vector<8x8xf32>
    %35 = arith.addf %31, %34 : vector<8x8xf32>
    %c1_26 = arith.constant 1 : index
    %c0_27 = arith.constant 0 : index
    %c0_28 = arith.constant 0 : index
    %36 = vector.load %arg6[%c1_26, %c0_27, %c0_28] : memref<4x32x8xf32, #tpu.memory_space<vmem>>, vector<1x32x8xf32>
    %37 = vector.shape_cast %36 : vector<1x32x8xf32> to vector<32x8xf32>
    %cst_29 = arith.constant dense<0.000000e+00> : vector<8x8xf32>
    %38 = tpu.matmul %3, %37, %cst_29 {dimension_numbers = #tpu.dot_dimension_numbers<[1], [0], [0], [1], [0, 0, 1, 1], [], []>} : vector<8x32xf32>, vector<32x8xf32>, vector<8x8xf32> -> vector<8x8xf32>
    %39 = vector.extract_strided_slice %6 {offsets = [1, 1, 0], sizes = [1, 1, 8], strides = [1, 1, 1]} : vector<3x4x8xf32> to vector<1x1x8xf32>
    %40 = vector.shape_cast %39 : vector<1x1x8xf32> to vector<1x8xf32>
    %41 = vector.broadcast %40 : vector<1x8xf32> to vector<8x8xf32>
    %42 = arith.addf %38, %41 : vector<8x8xf32>
    %c1_30 = arith.constant 1 : index
    %c0_31 = arith.constant 0 : index
    %c0_32 = arith.constant 0 : index
    %43 = vector.load %arg7[%c1_30, %c0_31, %c0_32] : memref<4x32x8xf32, #tpu.memory_space<vmem>>, vector<1x32x8xf32>
    %44 = vector.shape_cast %43 : vector<1x32x8xf32> to vector<32x8xf32>
    %cst_33 = arith.constant dense<0.000000e+00> : vector<8x8xf32>
    %45 = tpu.matmul %5, %44, %cst_33 {dimension_numbers = #tpu.dot_dimension_numbers<[1], [0], [0], [1], [0, 0, 1, 1], [], []>} : vector<8x32xf32>, vector<32x8xf32>, vector<8x8xf32> -> vector<8x8xf32>
    %46 = vector.extract_strided_slice %6 {offsets = [2, 1, 0], sizes = [1, 1, 8], strides = [1, 1, 1]} : vector<3x4x8xf32> to vector<1x1x8xf32>
    %47 = vector.shape_cast %46 : vector<1x1x8xf32> to vector<1x8xf32>
    %48 = vector.broadcast %47 : vector<1x8xf32> to vector<8x8xf32>
    %49 = arith.addf %45, %48 : vector<8x8xf32>
    %cst_34 = arith.constant dense<0.000000e+00> : vector<8x8xf32>
    %50 = tpu.matmul %35, %42, %cst_34 {dimension_numbers = #tpu.dot_dimension_numbers<[1], [1], [0], [0], [0, 0, 1, 0], [], []>} : vector<8x8xf32>, vector<8x8xf32>, vector<8x8xf32> -> vector<8x8xf32>
    %c2 = arith.constant 2 : index
    %c0_35 = arith.constant 0 : index
    %c0_36 = arith.constant 0 : index
    %51 = vector.load %arg5[%c2, %c0_35, %c0_36] : memref<4x32x8xf32, #tpu.memory_space<vmem>>, vector<1x32x8xf32>
    %52 = vector.shape_cast %51 : vector<1x32x8xf32> to vector<32x8xf32>
    %cst_37 = arith.constant dense<0.000000e+00> : vector<8x8xf32>
    %53 = tpu.matmul %1, %52, %cst_37 {dimension_numbers = #tpu.dot_dimension_numbers<[1], [0], [0], [1], [0, 0, 1, 1], [], []>} : vector<8x32xf32>, vector<32x8xf32>, vector<8x8xf32> -> vector<8x8xf32>
    %54 = vector.extract_strided_slice %6 {offsets = [0, 2, 0], sizes = [1, 1, 8], strides = [1, 1, 1]} : vector<3x4x8xf32> to vector<1x1x8xf32>
    %55 = vector.shape_cast %54 : vector<1x1x8xf32> to vector<1x8xf32>
    %56 = vector.broadcast %55 : vector<1x8xf32> to vector<8x8xf32>
    %57 = arith.addf %53, %56 : vector<8x8xf32>
    %c2_38 = arith.constant 2 : index
    %c0_39 = arith.constant 0 : index
    %c0_40 = arith.constant 0 : index
    %58 = vector.load %arg6[%c2_38, %c0_39, %c0_40] : memref<4x32x8xf32, #tpu.memory_space<vmem>>, vector<1x32x8xf32>
    %59 = vector.shape_cast %58 : vector<1x32x8xf32> to vector<32x8xf32>
    %cst_41 = arith.constant dense<0.000000e+00> : vector<8x8xf32>
    %60 = tpu.matmul %3, %59, %cst_41 {dimension_numbers = #tpu.dot_dimension_numbers<[1], [0], [0], [1], [0, 0, 1, 1], [], []>} : vector<8x32xf32>, vector<32x8xf32>, vector<8x8xf32> -> vector<8x8xf32>
    %61 = vector.extract_strided_slice %6 {offsets = [1, 2, 0], sizes = [1, 1, 8], strides = [1, 1, 1]} : vector<3x4x8xf32> to vector<1x1x8xf32>
    %62 = vector.shape_cast %61 : vector<1x1x8xf32> to vector<1x8xf32>
    %63 = vector.broadcast %62 : vector<1x8xf32> to vector<8x8xf32>
    %64 = arith.addf %60, %63 : vector<8x8xf32>
    %c2_42 = arith.constant 2 : index
    %c0_43 = arith.constant 0 : index
    %c0_44 = arith.constant 0 : index
    %65 = vector.load %arg7[%c2_42, %c0_43, %c0_44] : memref<4x32x8xf32, #tpu.memory_space<vmem>>, vector<1x32x8xf32>
    %66 = vector.shape_cast %65 : vector<1x32x8xf32> to vector<32x8xf32>
    %cst_45 = arith.constant dense<0.000000e+00> : vector<8x8xf32>
    %67 = tpu.matmul %5, %66, %cst_45 {dimension_numbers = #tpu.dot_dimension_numbers<[1], [0], [0], [1], [0, 0, 1, 1], [], []>} : vector<8x32xf32>, vector<32x8xf32>, vector<8x8xf32> -> vector<8x8xf32>
    %68 = vector.extract_strided_slice %6 {offsets = [2, 2, 0], sizes = [1, 1, 8], strides = [1, 1, 1]} : vector<3x4x8xf32> to vector<1x1x8xf32>
    %69 = vector.shape_cast %68 : vector<1x1x8xf32> to vector<1x8xf32>
    %70 = vector.broadcast %69 : vector<1x8xf32> to vector<8x8xf32>
    %71 = arith.addf %67, %70 : vector<8x8xf32>
    %cst_46 = arith.constant dense<0.000000e+00> : vector<8x8xf32>
    %72 = tpu.matmul %57, %64, %cst_46 {dimension_numbers = #tpu.dot_dimension_numbers<[1], [1], [0], [0], [0, 0, 1, 0], [], []>} : vector<8x8xf32>, vector<8x8xf32>, vector<8x8xf32> -> vector<8x8xf32>
    %c3 = arith.constant 3 : index
    %c0_47 = arith.constant 0 : index
    %c0_48 = arith.constant 0 : index
    %73 = vector.load %arg5[%c3, %c0_47, %c0_48] : memref<4x32x8xf32, #tpu.memory_space<vmem>>, vector<1x32x8xf32>
    %74 = vector.shape_cast %73 : vector<1x32x8xf32> to vector<32x8xf32>
    %cst_49 = arith.constant dense<0.000000e+00> : vector<8x8xf32>
    %75 = tpu.matmul %1, %74, %cst_49 {dimension_numbers = #tpu.dot_dimension_numbers<[1], [0], [0], [1], [0, 0, 1, 1], [], []>} : vector<8x32xf32>, vector<32x8xf32>, vector<8x8xf32> -> vector<8x8xf32>
    %76 = vector.extract_strided_slice %6 {offsets = [0, 3, 0], sizes = [1, 1, 8], strides = [1, 1, 1]} : vector<3x4x8xf32> to vector<1x1x8xf32>
    %77 = vector.shape_cast %76 : vector<1x1x8xf32> to vector<1x8xf32>
    %78 = vector.broadcast %77 : vector<1x8xf32> to vector<8x8xf32>
    %79 = arith.addf %75, %78 : vector<8x8xf32>
    %c3_50 = arith.constant 3 : index
    %c0_51 = arith.constant 0 : index
    %c0_52 = arith.constant 0 : index
    %80 = vector.load %arg6[%c3_50, %c0_51, %c0_52] : memref<4x32x8xf32, #tpu.memory_space<vmem>>, vector<1x32x8xf32>
    %81 = vector.shape_cast %80 : vector<1x32x8xf32> to vector<32x8xf32>
    %cst_53 = arith.constant dense<0.000000e+00> : vector<8x8xf32>
    %82 = tpu.matmul %3, %81, %cst_53 {dimension_numbers = #tpu.dot_dimension_numbers<[1], [0], [0], [1], [0, 0, 1, 1], [], []>} : vector<8x32xf32>, vector<32x8xf32>, vector<8x8xf32> -> vector<8x8xf32>
    %83 = vector.extract_strided_slice %6 {offsets = [1, 3, 0], sizes = [1, 1, 8], strides = [1, 1, 1]} : vector<3x4x8xf32> to vector<1x1x8xf32>
    %84 = vector.shape_cast %83 : vector<1x1x8xf32> to vector<1x8xf32>
    %85 = vector.broadcast %84 : vector<1x8xf32> to vector<8x8xf32>
    %86 = arith.addf %82, %85 : vector<8x8xf32>
    %c3_54 = arith.constant 3 : index
    %c0_55 = arith.constant 0 : index
    %c0_56 = arith.constant 0 : index
    %87 = vector.load %arg7[%c3_54, %c0_55, %c0_56] : memref<4x32x8xf32, #tpu.memory_space<vmem>>, vector<1x32x8xf32>
    %88 = vector.shape_cast %87 : vector<1x32x8xf32> to vector<32x8xf32>
    %cst_57 = arith.constant dense<0.000000e+00> : vector<8x8xf32>
    %89 = tpu.matmul %5, %88, %cst_57 {dimension_numbers = #tpu.dot_dimension_numbers<[1], [0], [0], [1], [0, 0, 1, 1], [], []>} : vector<8x32xf32>, vector<32x8xf32>, vector<8x8xf32> -> vector<8x8xf32>
    %90 = vector.extract_strided_slice %6 {offsets = [2, 3, 0], sizes = [1, 1, 8], strides = [1, 1, 1]} : vector<3x4x8xf32> to vector<1x1x8xf32>
    %91 = vector.shape_cast %90 : vector<1x1x8xf32> to vector<1x8xf32>
    %92 = vector.broadcast %91 : vector<1x8xf32> to vector<8x8xf32>
    %93 = arith.addf %89, %92 : vector<8x8xf32>
    %cst_58 = arith.constant dense<0.000000e+00> : vector<8x8xf32>
    %94 = tpu.matmul %79, %86, %cst_58 {dimension_numbers = #tpu.dot_dimension_numbers<[1], [1], [0], [0], [0, 0, 1, 0], [], []>} : vector<8x8xf32>, vector<8x8xf32>, vector<8x8xf32> -> vector<8x8xf32>
    %95 = tpu.concatenate %28, %50, %72, %94 in 0 : vector<8x8xf32>, vector<8x8xf32>, vector<8x8xf32>, vector<8x8xf32> -> vector<32x8xf32>
    %c0_59 = arith.constant 0 : index
    %c0_60 = arith.constant 0 : index
    %c0_61 = arith.constant 0 : index
    %96 = vector.load %arg4[%c0_59, %c0_60, %c0_61] : memref<1x1x8xf32, #tpu.memory_space<vmem>>, vector<1x1x8xf32>
    %97 = vector.shape_cast %96 : vector<1x1x8xf32> to vector<1x8xf32>
    %98 = vector.broadcast %97 : vector<1x8xf32> to vector<32x8xf32>
    %99 = arith.addf %95, %98 : vector<32x8xf32>
    %cst_62 = arith.constant dense<0xFF800000> : vector<32xf32>
    %100 = vector.multi_reduction <maximumf>, %99, %cst_62 [1] : vector<32x8xf32> to vector<32xf32>
    %101 = vector.shape_cast %100 : vector<32xf32> to vector<32x1xf32>
    %102 = vector.broadcast %101 : vector<32x1xf32> to vector<32x8xf32>
    %103 = arith.subf %99, %102 : vector<32x8xf32>
    %104 = math.exp %103 : vector<32x8xf32>
    %cst_63 = arith.constant dense<0.000000e+00> : vector<32xf32>
    %105 = vector.multi_reduction <add>, %104, %cst_63 [1] : vector<32x8xf32> to vector<32xf32>
    %106 = vector.shape_cast %105 : vector<32xf32> to vector<32x1xf32>
    %107 = tpu.reciprocal %106 {approx = true} : vector<32x1xf32> -> vector<32x1xf32>
    %108 = vector.broadcast %107 : vector<32x1xf32> to vector<32x8xf32>
    %109 = arith.mulf %104, %108 : vector<32x8xf32>
    %cst_64 = arith.constant 0.000000e+00 : f32
    %110 = vector.broadcast %cst_64 : f32 to vector<8x32xf32>
    %111 = vector.extract_strided_slice %109 {offsets = [0, 0], sizes = [8, 8], strides = [1, 1]} : vector<32x8xf32> to vector<8x8xf32>
    %cst_65 = arith.constant dense<0.000000e+00> : vector<8x8xf32>
    %112 = tpu.matmul %111, %27, %cst_65 {dimension_numbers = #tpu.dot_dimension_numbers<[1], [0], [0], [1], [0, 0, 1, 1], [], []>} : vector<8x8xf32>, vector<8x8xf32>, vector<8x8xf32> -> vector<8x8xf32>
    %c0_66 = arith.constant 0 : index
    %c0_67 = arith.constant 0 : index
    %c0_68 = arith.constant 0 : index
    %113 = vector.load %arg8[%c0_66, %c0_67, %c0_68] : memref<4x8x32xf32, #tpu.memory_space<vmem>>, vector<1x8x32xf32>
    %114 = vector.shape_cast %113 : vector<1x8x32xf32> to vector<8x32xf32>
    %cst_69 = arith.constant dense<0.000000e+00> : vector<8x32xf32>
    %115 = tpu.matmul %112, %114, %cst_69 {dimension_numbers = #tpu.dot_dimension_numbers<[1], [0], [0], [1], [0, 0, 1, 1], [], []>} : vector<8x8xf32>, vector<8x32xf32>, vector<8x32xf32> -> vector<8x32xf32>
    %116 = arith.addf %110, %115 : vector<8x32xf32>
    %117 = vector.extract_strided_slice %109 {offsets = [8, 0], sizes = [8, 8], strides = [1, 1]} : vector<32x8xf32> to vector<8x8xf32>
    %cst_70 = arith.constant dense<0.000000e+00> : vector<8x8xf32>
    %118 = tpu.matmul %117, %49, %cst_70 {dimension_numbers = #tpu.dot_dimension_numbers<[1], [0], [0], [1], [0, 0, 1, 1], [], []>} : vector<8x8xf32>, vector<8x8xf32>, vector<8x8xf32> -> vector<8x8xf32>
    %c1_71 = arith.constant 1 : index
    %c0_72 = arith.constant 0 : index
    %c0_73 = arith.constant 0 : index
    %119 = vector.load %arg8[%c1_71, %c0_72, %c0_73] : memref<4x8x32xf32, #tpu.memory_space<vmem>>, vector<1x8x32xf32>
    %120 = vector.shape_cast %119 : vector<1x8x32xf32> to vector<8x32xf32>
    %cst_74 = arith.constant dense<0.000000e+00> : vector<8x32xf32>
    %121 = tpu.matmul %118, %120, %cst_74 {dimension_numbers = #tpu.dot_dimension_numbers<[1], [0], [0], [1], [0, 0, 1, 1], [], []>} : vector<8x8xf32>, vector<8x32xf32>, vector<8x32xf32> -> vector<8x32xf32>
    %122 = arith.addf %116, %121 : vector<8x32xf32>
    %123 = vector.extract_strided_slice %109 {offsets = [16, 0], sizes = [8, 8], strides = [1, 1]} : vector<32x8xf32> to vector<8x8xf32>
    %cst_75 = arith.constant dense<0.000000e+00> : vector<8x8xf32>
    %124 = tpu.matmul %123, %71, %cst_75 {dimension_numbers = #tpu.dot_dimension_numbers<[1], [0], [0], [1], [0, 0, 1, 1], [], []>} : vector<8x8xf32>, vector<8x8xf32>, vector<8x8xf32> -> vector<8x8xf32>
    %c2_76 = arith.constant 2 : index
    %c0_77 = arith.constant 0 : index
    %c0_78 = arith.constant 0 : index
    %125 = vector.load %arg8[%c2_76, %c0_77, %c0_78] : memref<4x8x32xf32, #tpu.memory_space<vmem>>, vector<1x8x32xf32>
    %126 = vector.shape_cast %125 : vector<1x8x32xf32> to vector<8x32xf32>
    %cst_79 = arith.constant dense<0.000000e+00> : vector<8x32xf32>
    %127 = tpu.matmul %124, %126, %cst_79 {dimension_numbers = #tpu.dot_dimension_numbers<[1], [0], [0], [1], [0, 0, 1, 1], [], []>} : vector<8x8xf32>, vector<8x32xf32>, vector<8x32xf32> -> vector<8x32xf32>
    %128 = arith.addf %122, %127 : vector<8x32xf32>
    %129 = vector.extract_strided_slice %109 {offsets = [24, 0], sizes = [8, 8], strides = [1, 1]} : vector<32x8xf32> to vector<8x8xf32>
    %cst_80 = arith.constant dense<0.000000e+00> : vector<8x8xf32>
    %130 = tpu.matmul %129, %93, %cst_80 {dimension_numbers = #tpu.dot_dimension_numbers<[1], [0], [0], [1], [0, 0, 1, 1], [], []>} : vector<8x8xf32>, vector<8x8xf32>, vector<8x8xf32> -> vector<8x8xf32>
    %c3_81 = arith.constant 3 : index
    %c0_82 = arith.constant 0 : index
    %c0_83 = arith.constant 0 : index
    %131 = vector.load %arg8[%c3_81, %c0_82, %c0_83] : memref<4x8x32xf32, #tpu.memory_space<vmem>>, vector<1x8x32xf32>
    %132 = vector.shape_cast %131 : vector<1x8x32xf32> to vector<8x32xf32>
    %cst_84 = arith.constant dense<0.000000e+00> : vector<8x32xf32>
    %133 = tpu.matmul %130, %132, %cst_84 {dimension_numbers = #tpu.dot_dimension_numbers<[1], [0], [0], [1], [0, 0, 1, 1], [], []>} : vector<8x8xf32>, vector<8x32xf32>, vector<8x32xf32> -> vector<8x32xf32>
    %134 = arith.addf %128, %133 : vector<8x32xf32>
    %c0_85 = arith.constant 0 : index
    %c0_86 = arith.constant 0 : index
    %135 = vector.load %arg10[%c0_85, %c0_86] : memref<1x32xf32, #tpu.memory_space<vmem>>, vector<1x32xf32>
    %136 = vector.broadcast %135 : vector<1x32xf32> to vector<8x32xf32>
    %137 = arith.addf %134, %136 : vector<8x32xf32>
    %c0_87 = arith.constant 0 : index
    %c0_88 = arith.constant 0 : index
    %c0_89 = arith.constant 0 : index
    %138 = vector.load %arg11[%c0_87, %c0_88, %c0_89] : memref<1x8x32xf32, #tpu.memory_space<vmem>>, vector<1x8x32xf32>
    %139 = vector.shape_cast %138 : vector<1x8x32xf32> to vector<8x32xf32>
    %140 = vector.shape_cast %137 : vector<8x32xf32> to vector<1x8x32xf32>
    tpu.vector_store %arg11[%c0_87, %c0_88, %c0_89], %140 {strides = array<i32>} : memref<1x8x32xf32, #tpu.memory_space<vmem>>, vector<1x8x32xf32>,
    return
  }
  func.func @transform_0(%arg0: i32) -> (i32, i32, i32) {
    %c0_i32 = arith.constant 0 : i32
    %c0_i32_0 = arith.constant 0 : i32
    %c0_i32_1 = arith.constant 0 : i32
    return %arg0, %c0_i32, %c0_i32_0 : i32, i32, i32
  }
  func.func @transform_1(%arg0: i32) -> (i32, i32, i32) {
    %c0_i32 = arith.constant 0 : i32
    %c0_i32_0 = arith.constant 0 : i32
    %c0_i32_1 = arith.constant 0 : i32
    return %arg0, %c0_i32, %c0_i32_0 : i32, i32, i32
  }
  func.func @transform_2(%arg0: i32) -> (i32, i32, i32) {
    %c0_i32 = arith.constant 0 : i32
    %c0_i32_0 = arith.constant 0 : i32
    %c0_i32_1 = arith.constant 0 : i32
    return %arg0, %c0_i32, %c0_i32_0 : i32, i32, i32
  }
  func.func @transform_3(%arg0: i32) -> (i32, i32, i32) {
    %c0_i32 = arith.constant 0 : i32
    %c0_i32_0 = arith.constant 0 : i32
    %c0_i32_1 = arith.constant 0 : i32
    return %arg0, %c0_i32, %c0_i32_0 : i32, i32, i32
  }
  func.func @transform_4(%arg0: i32) -> (i32, i32, i32) {
    %c0_i32 = arith.constant 0 : i32
    %c0_i32_0 = arith.constant 0 : i32
    %c0_i32_1 = arith.constant 0 : i32
    %c0_i32_2 = arith.constant 0 : i32
    return %c0_i32, %c0_i32_0, %c0_i32_1 : i32, i32, i32
  }
  func.func @transform_5(%arg0: i32) -> (i32, i32, i32) {
    %c0_i32 = arith.constant 0 : i32
    %c0_i32_0 = arith.constant 0 : i32
    %c0_i32_1 = arith.constant 0 : i32
    %c0_i32_2 = arith.constant 0 : i32
    return %c0_i32, %c0_i32_0, %c0_i32_1 : i32, i32, i32
  }
  func.func @transform_6(%arg0: i32) -> (i32, i32, i32) {
    %c0_i32 = arith.constant 0 : i32
    %c0_i32_0 = arith.constant 0 : i32
    %c0_i32_1 = arith.constant 0 : i32
    %c0_i32_2 = arith.constant 0 : i32
    return %c0_i32, %c0_i32_0, %c0_i32_1 : i32, i32, i32
  }
  func.func @transform_7(%arg0: i32) -> (i32, i32, i32) {
    %c0_i32 = arith.constant 0 : i32
    %c0_i32_0 = arith.constant 0 : i32
    %c0_i32_1 = arith.constant 0 : i32
    %c0_i32_2 = arith.constant 0 : i32
    return %c0_i32, %c0_i32_0, %c0_i32_1 : i32, i32, i32
  }
  func.func @transform_8(%arg0: i32) -> (i32, i32, i32) {
    %c0_i32 = arith.constant 0 : i32
    %c0_i32_0 = arith.constant 0 : i32
    %c0_i32_1 = arith.constant 0 : i32
    %c0_i32_2 = arith.constant 0 : i32
    return %c0_i32, %c0_i32_0, %c0_i32_1 : i32, i32, i32
  }
  func.func @transform_9(%arg0: i32) -> (i32, i32) {
    %c0_i32 = arith.constant 0 : i32
    %c0_i32_0 = arith.constant 0 : i32
    %c0_i32_1 = arith.constant 0 : i32
    return %c0_i32, %c0_i32_0 : i32, i32
  }
  func.func @transform_10(%arg0: i32) -> (i32, i32, i32) {
    %c0_i32 = arith.constant 0 : i32
    %c0_i32_0 = arith.constant 0 : i32
    %c0_i32_1 = arith.constant 0 : i32
    return %arg0, %c0_i32, %c0_i32_0 : i32, i32, i32
  }
}

</mosaic_0001>

<llo_original>
// kernel: tpu_custom_call.1
$region0: #{tpu_custom_call.1}
  #allocation0 [shape = 'u32[]', space=smem, size = 0x4, offset = 0x4, fixed_abs, tag = 'smem constant byte address 0x4 - core index']
  #allocation1 [shape = 'u32[144,128]{1,0:T(1,128)}', space=vmem, size = 0x12000, scoped, tag = 'internal scratch']
  %s0 = inlined_call_operand.vmem [shape: f32[2,8,32], index: 0, kind: input, shape index: {}]
  %s1 = inlined_call_operand.vmem [shape: f32[2,8,32], index: 1, kind: input, shape index: {}]
  %s2 = inlined_call_operand.vmem [shape: f32[2,8,32], index: 2, kind: input, shape index: {}]
  %s3 = inlined_call_operand.vmem [shape: f32[2,1,8], index: 3, kind: input, shape index: {}]
  %s4 = inlined_call_operand.vmem [shape: f32[4,32,8], index: 4, kind: input, shape index: {}]
  %s5 = inlined_call_operand.vmem [shape: f32[4,32,8], index: 5, kind: input, shape index: {}]
  %s6 = inlined_call_operand.vmem [shape: f32[4,32,8], index: 6, kind: input, shape index: {}]
  %s7 = inlined_call_operand.vmem [shape: f32[4,8,32], index: 7, kind: input, shape index: {}]
  %s8 = inlined_call_operand.vmem [shape: f32[3,4,8], index: 8, kind: input, shape index: {}]
  %s9 = inlined_call_operand.vmem [shape: f32[1,32], index: 9, kind: input, shape index: {}]
  %s10 = inlined_call_operand.hbm [shape: f32[2,8,32], index: 10, kind: output, shape index: {}]
  %s11 = sld [smem:[#allocation0]]
  $region73: #{tpu_custom_call.1} parent=0
    _
  %s13 = ssub.s32 1, %s11
  %s14 = scalar_select 0, %s13, %s11
  $region1: #{tpu_custom_call.1} parent=0
    #allocation2 [shape = 'u8[8192]{0}', space=vmem, size = 0x2000, scoped, tag = 'output window, operand 0']
    #allocation3 [shape = 's32[2]{0}', space=sflag, size = 0x8, scoped, tag = 'scoped memory for tpu_custom_call.1']
    %15 = vsyncpa [#allocation3], 0
    %s16 = scalar_lea.sflag [#allocation3], 1
    %17 = vsyncpa %s16, 0
    loop: start=0, step=1, limit=4
    $region2: #{tpu_custom_call.1} parent=1 // loop_pre_header
      _
    $region3: #{tpu_custom_call.1} parent=1 // loop_header
      %s19 = sphi 0, %s23
      %p20 = scmp.ge.s32.totalorder %s19, 4
      %s29 = sphi 0, %s31
      %s32 = sphi 0, %s29
      %s33 = sphi 0, %s32
      %s49 = sphi 0, %s33
      %s55 = sphi 0, %s57
      %s58 = sphi 0, %s55
      %s59 = sphi 0, %s58
      %s75 = sphi 0, %s59
      %s81 = sphi 0, %s83
      %s84 = sphi 0, %s81
      %s85 = sphi 0, %s84
      %s101 = sphi 0, %s85
      %s107 = sphi 0, %s109
      %s110 = sphi 0, %s107
      %s111 = sphi 0, %s110
      %s127 = sphi 0, %s111
      %s131 = sphi 0, %s131
      %s133 = sphi 0, %s131
      %s134 = sphi 0, %s133
      %s148 = sphi 0, %s134
      %s152 = sphi 0, %s152
      %s154 = sphi 0, %s152
      %s155 = sphi 0, %s154
      %s169 = sphi 0, %s155
      %s173 = sphi 0, %s173
      %s175 = sphi 0, %s173
      %s176 = sphi 0, %s175
      %s190 = sphi 0, %s176
      %s194 = sphi 0, %s194
      %s196 = sphi 0, %s194
      %s197 = sphi 0, %s196
      %s211 = sphi 0, %s197
      %s215 = sphi 0, %s215
      %s217 = sphi 0, %s215
      %s218 = sphi 0, %s217
      %s232 = sphi 0, %s218
      %s236 = sphi 0, %s236
      %s238 = sphi 0, %s236
      %s239 = sphi 0, %s238
      %s253 = sphi 0, %s239
      %s259 = sphi 0, %s261
      %s262 = sphi 0, %s259
      %s263 = sphi 0, %s262
      %s279 = sphi 0, %s263
    $region4: #{tpu_custom_call.1} parent=1 // loop_header_branch
      %22 = sbr.rel (%p20) target = $region8
    $region5: #{tpu_custom_call.1} parent=1 // loop_body
      %s24 = ssub.s32 %s19, 1
      %s25 = ssub.s32 %s19, 2
      %s26 = sadd.s32 %s19, 1
      %s27 = ssub.s32 %s19, %s26
      %p28 = scmp.eq.s32.totalorder %s27, 0
      %s30 = sadd.s32 %s29, 1
      %s31 = scalar_select %p28, %s29, %s30
      %p34 = pneg %p28
      %p35 = scmp.eq.s32.totalorder %s19, 1
      %p36 = por %p34, %p35
      %p37 = scmp.ne.s32.totalorder %s29, %s32
      %p38 = scmp.eq.s32.totalorder %s19, 0
      %p39 = por %p37, %p38
      %p40 = scmp.ne.s32.totalorder %s29, %s32
      %p41 = scmp.eq.s32.totalorder %s24, 1
      %p42 = por %p40, %p41
      %p43 = scmp.ne.s32.totalorder %s32, %s33
      %p44 = scmp.eq.s32.totalorder %s24, 0
      %p45 = por %p43, %p44
      %p46 = scmp.ne.s32.totalorder %s32, %s33
      %p47 = scmp.eq.s32.totalorder %s25, 1
      %p48 = por %p46, %p47
      %p50 = scmp.ne.s32.totalorder %s33, %s49
      %p51 = scmp.eq.s32.totalorder %s25, 0
      %p52 = por %p50, %p51
      %s53 = ssub.s32 %s19, %s26
      %p54 = scmp.eq.s32.totalorder %s53, 0
      %s56 = sadd.s32 %s55, 1
      %s57 = scalar_select %p54, %s55, %s56
      %p60 = pneg %p54
      %p61 = scmp.eq.s32.totalorder %s19, 1
      %p62 = por %p60, %p61
      %p63 = scmp.ne.s32.totalorder %s55, %s58
      %p64 = scmp.eq.s32.totalorder %s19, 0
      %p65 = por %p63, %p64
      %p66 = scmp.ne.s32.totalorder %s55, %s58
      %p67 = scmp.eq.s32.totalorder %s24, 1
      %p68 = por %p66, %p67
      %p69 = scmp.ne.s32.totalorder %s58, %s59
      %p70 = scmp.eq.s32.totalorder %s24, 0
      %p71 = por %p69, %p70
      %p72 = scmp.ne.s32.totalorder %s58, %s59
      %p73 = scmp.eq.s32.totalorder %s25, 1
      %p74 = por %p72, %p73
      %p76 = scmp.ne.s32.totalorder %s59, %s75
      %p77 = scmp.eq.s32.totalorder %s25, 0
      %p78 = por %p76, %p77
      %s79 = ssub.s32 %s19, %s26
      %p80 = scmp.eq.s32.totalorder %s79, 0
      %s82 = sadd.s32 %s81, 1
      %s83 = scalar_select %p80, %s81, %s82
      %p86 = pneg %p80
      %p87 = scmp.eq.s32.totalorder %s19, 1
      %p88 = por %p86, %p87
      %p89 = scmp.ne.s32.totalorder %s81, %s84
      %p90 = scmp.eq.s32.totalorder %s19, 0
      %p91 = por %p89, %p90
      %p92 = scmp.ne.s32.totalorder %s81, %s84
      %p93 = scmp.eq.s32.totalorder %s24, 1
      %p94 = por %p92, %p93
      %p95 = scmp.ne.s32.totalorder %s84, %s85
      %p96 = scmp.eq.s32.totalorder %s24, 0
      %p97 = por %p95, %p96
      %p98 = scmp.ne.s32.totalorder %s84, %s85
      %p99 = scmp.eq.s32.totalorder %s25, 1
      %p100 = por %p98, %p99
      %p102 = scmp.ne.s32.totalorder %s85, %s101
      %p103 = scmp.eq.s32.totalorder %s25, 0
      %p104 = por %p102, %p103
      %s105 = ssub.s32 %s19, %s26
      %p106 = scmp.eq.s32.totalorder %s105, 0
      %s108 = sadd.s32 %s107, 1
      %s109 = scalar_select %p106, %s107, %s108
      %p112 = pneg %p106
      %p113 = scmp.eq.s32.totalorder %s19, 1
      %p114 = por %p112, %p113
      %p115 = scmp.ne.s32.totalorder %s107, %s110
      %p116 = scmp.eq.s32.totalorder %s19, 0
      %p117 = por %p115, %p116
      %p118 = scmp.ne.s32.totalorder %s107, %s110
      %p119 = scmp.eq.s32.totalorder %s24, 1
      %p120 = por %p118, %p119
      %p121 = scmp.ne.s32.totalorder %s110, %s111
      %p122 = scmp.eq.s32.totalorder %s24, 0
      %p123 = por %p121, %p122
      %p124 = scmp.ne.s32.totalorder %s110, %s111
      %p125 = scmp.eq.s32.totalorder %s25, 1
      %p126 = por %p124, %p125
      %p128 = scmp.ne.s32.totalorder %s111, %s127
      %p129 = scmp.eq.s32.totalorder %s25, 0
      %p130 = por %p128, %p129
      %s132 = sadd.s32 %s131, 1
      %p135 = scmp.eq.s32.totalorder %s19, 1
      %p136 = scmp.ne.s32.totalorder %s131, %s133
      %p137 = scmp.eq.s32.totalorder %s19, 0
      %p138 = por %p136, %p137
      %p139 = scmp.ne.s32.totalorder %s131, %s133
      %p140 = scmp.eq.s32.totalorder %s24, 1
      %p141 = por %p139, %p140
      %p142 = scmp.ne.s32.totalorder %s133, %s134
      %p143 = scmp.eq.s32.totalorder %s24, 0
      %p144 = por %p142, %p143
      %p145 = scmp.ne.s32.totalorder %s133, %s134
      %p146 = scmp.eq.s32.totalorder %s25, 1
      %p147 = por %p145, %p146
      %p149 = scmp.ne.s32.totalorder %s134, %s148
      %p150 = scmp.eq.s32.totalorder %s25, 0
      %p151 = por %p149, %p150
      %s153 = sadd.s32 %s152, 1
      %p156 = scmp.eq.s32.totalorder %s19, 1
      %p157 = scmp.ne.s32.totalorder %s152, %s154
      %p158 = scmp.eq.s32.totalorder %s19, 0
      %p159 = por %p157, %p158
      %p160 = scmp.ne.s32.totalorder %s152, %s154
      %p161 = scmp.eq.s32.totalorder %s24, 1
      %p162 = por %p160, %p161
      %p163 = scmp.ne.s32.totalorder %s154, %s155
      %p164 = scmp.eq.s32.totalorder %s24, 0
      %p165 = por %p163, %p164
      %p166 = scmp.ne.s32.totalorder %s154, %s155
      %p167 = scmp.eq.s32.totalorder %s25, 1
      %p168 = por %p166, %p167
      %p170 = scmp.ne.s32.totalorder %s155, %s169
      %p171 = scmp.eq.s32.totalorder %s25, 0
      %p172 = por %p170, %p171
      %s174 = sadd.s32 %s173, 1
      %p177 = scmp.eq.s32.totalorder %s19, 1
      %p178 = scmp.ne.s32.totalorder %s173, %s175
      %p179 = scmp.eq.s32.totalorder %s19, 0
      %p180 = por %p178, %p179
      %p181 = scmp.ne.s32.totalorder %s173, %s175
      %p182 = scmp.eq.s32.totalorder %s24, 1
      %p183 = por %p181, %p182
      %p184 = scmp.ne.s32.totalorder %s175, %s176
      %p185 = scmp.eq.s32.totalorder %s24, 0
      %p186 = por %p184, %p185
      %p187 = scmp.ne.s32.totalorder %s175, %s176
      %p188 = scmp.eq.s32.totalorder %s25, 1
      %p189 = por %p187, %p188
      %p191 = scmp.ne.s32.totalorder %s176, %s190
      %p192 = scmp.eq.s32.totalorder %s25, 0
      %p193 = por %p191, %p192
      %s195 = sadd.s32 %s194, 1
      %p198 = scmp.eq.s32.totalorder %s19, 1
      %p199 = scmp.ne.s32.totalorder %s194, %s196
      %p200 = scmp.eq.s32.totalorder %s19, 0
      %p201 = por %p199, %p200
      %p202 = scmp.ne.s32.totalorder %s194, %s196
      %p203 = scmp.eq.s32.totalorder %s24, 1
      %p204 = por %p202, %p203
      %p205 = scmp.ne.s32.totalorder %s196, %s197
      %p206 = scmp.eq.s32.totalorder %s24, 0
      %p207 = por %p205, %p206
      %p208 = scmp.ne.s32.totalorder %s196, %s197
      %p209 = scmp.eq.s32.totalorder %s25, 1
      %p210 = por %p208, %p209
      %p212 = scmp.ne.s32.totalorder %s197, %s211
      %p213 = scmp.eq.s32.totalorder %s25, 0
      %p214 = por %p212, %p213
      %s216 = sadd.s32 %s215, 1
      %p219 = scmp.eq.s32.totalorder %s19, 1
      %p220 = scmp.ne.s32.totalorder %s215, %s217
      %p221 = scmp.eq.s32.totalorder %s19, 0
      %p222 = por %p220, %p221
      %p223 = scmp.ne.s32.totalorder %s215, %s217
      %p224 = scmp.eq.s32.totalorder %s24, 1
      %p225 = por %p223, %p224
      %p226 = scmp.ne.s32.totalorder %s217, %s218
      %p227 = scmp.eq.s32.totalorder %s24, 0
      %p228 = por %p226, %p227
      %p229 = scmp.ne.s32.totalorder %s217, %s218
      %p230 = scmp.eq.s32.totalorder %s25, 1
      %p231 = por %p229, %p230
      %p233 = scmp.ne.s32.totalorder %s218, %s232
      %p234 = scmp.eq.s32.totalorder %s25, 0
      %p235 = por %p233, %p234
      %s237 = sadd.s32 %s236, 1
      %p240 = scmp.eq.s32.totalorder %s19, 1
      %p241 = scmp.ne.s32.totalorder %s236, %s238
      %p242 = scmp.eq.s32.totalorder %s19, 0
      %p243 = por %p241, %p242
      %p244 = scmp.ne.s32.totalorder %s236, %s238
      %p245 = scmp.eq.s32.totalorder %s24, 1
      %p246 = por %p244, %p245
      %p247 = scmp.ne.s32.totalorder %s238, %s239
      %p248 = scmp.eq.s32.totalorder %s24, 0
      %p249 = por %p247, %p248
      %p250 = scmp.ne.s32.totalorder %s238, %s239
      %p251 = scmp.eq.s32.totalorder %s25, 1
      %p252 = por %p250, %p251
      %p254 = scmp.ne.s32.totalorder %s239, %s253
      %p255 = scmp.eq.s32.totalorder %s25, 0
      %p256 = por %p254, %p255
      %s257 = ssub.s32 %s19, %s26
      %p258 = scmp.eq.s32.totalorder %s257, 0
      %s260 = sadd.s32 %s259, 1
      %s261 = scalar_select %p258, %s259, %s260
      %p264 = pneg %p258
      %p265 = scmp.eq.s32.totalorder %s19, 1
      %p266 = por %p264, %p265
      %p267 = scmp.ne.s32.totalorder %s259, %s262
      %p268 = scmp.eq.s32.totalorder %s19, 0
      %p269 = por %p267, %p268
      %p270 = scmp.ne.s32.totalorder %s259, %s262
      %p271 = scmp.eq.s32.totalorder %s24, 1
      %p272 = por %p270, %p271
      %p273 = scmp.ne.s32.totalorder %s262, %s263
      %p274 = scmp.eq.s32.totalorder %s24, 0
      %p275 = por %p273, %p274
      %p276 = scmp.ne.s32.totalorder %s262, %s263
      %p277 = scmp.eq.s32.totalorder %s25, 1
      %p278 = por %p276, %p277
      %p280 = scmp.ne.s32.totalorder %s263, %s279
      %p281 = scmp.eq.s32.totalorder %s25, 0
      %p282 = por %p280, %p281
      %p283 = scmp.le.s32.totalorder 1, %s19
      %p284 = scmp.lt.s32.totalorder %s19, 3
      %p285 = pnand %p283, %p284
      %p286 = pneg %p285
      // Predicated region
      $region9: #{tpu_custom_call.1} parent=5 // pred_check
        _
      $region10: #{tpu_custom_call.1} parent=5 // pred_check_branch
        %288 = sbr.rel (%p285) target = $region12
      $region11: #{tpu_custom_call.1} parent=5 // pred_region
        %s289 = ssub.s32 %s19, 1
        // Predicated region
        $region13: #{tpu_custom_call.1} parent=11 // pred_check
          %p290 = pneg %p144
        $region14: #{tpu_custom_call.1} parent=11 // pred_check_branch
          %292 = sbr.rel (%p290) target = $region16
        $region15: #{tpu_custom_call.1} parent=11 // pred_region
          _
        $region16: #{tpu_custom_call.1} parent=11 // pred_fallthru
          _
        // Predicated region
        $region17: #{tpu_custom_call.1} parent=11 // pred_check
          %p293 = pneg %p165
        $region18: #{tpu_custom_call.1} parent=11 // pred_check_branch
          %295 = sbr.rel (%p293) target = $region20
        $region19: #{tpu_custom_call.1} parent=11 // pred_region
          _
        $region20: #{tpu_custom_call.1} parent=11 // pred_fallthru
          _
        // Predicated region
        $region21: #{tpu_custom_call.1} parent=11 // pred_check
          %p296 = pneg %p186
        $region22: #{tpu_custom_call.1} parent=11 // pred_check_branch
          %298 = sbr.rel (%p296) target = $region24
        $region23: #{tpu_custom_call.1} parent=11 // pred_region
          _
        $region24: #{tpu_custom_call.1} parent=11 // pred_fallthru
          _
        // Predicated region
        $region25: #{tpu_custom_call.1} parent=11 // pred_check
          %p299 = pneg %p207
        $region26: #{tpu_custom_call.1} parent=11 // pred_check_branch
          %301 = sbr.rel (%p299) target = $region28
        $region27: #{tpu_custom_call.1} parent=11 // pred_region
          _
        $region28: #{tpu_custom_call.1} parent=11 // pred_fallthru
          _
        // Predicated region
        $region29: #{tpu_custom_call.1} parent=11 // pred_check
          %p302 = pneg %p228
        $region30: #{tpu_custom_call.1} parent=11 // pred_check_branch
          %304 = sbr.rel (%p302) target = $region32
        $region31: #{tpu_custom_call.1} parent=11 // pred_region
          _
        $region32: #{tpu_custom_call.1} parent=11 // pred_fallthru
          _
        // Predicated region
        $region33: #{tpu_custom_call.1} parent=11 // pred_check
          %p305 = pneg %p249
        $region34: #{tpu_custom_call.1} parent=11 // pred_check_branch
          %307 = sbr.rel (%p305) target = $region36
        $region35: #{tpu_custom_call.1} parent=11 // pred_region
          _
        $region36: #{tpu_custom_call.1} parent=11 // pred_fallthru
          _
      $region12: #{tpu_custom_call.1} parent=5 // pred_fallthru
        _
      %p308 = scmp.lt.s32.totalorder %s19, 2
      // Predicated region
      $region37: #{tpu_custom_call.1} parent=5 // pred_check
        %p309 = pneg %p308
      $region38: #{tpu_custom_call.1} parent=5 // pred_check_branch
        %311 = sbr.rel (%p309) target = $region40
      $region39: #{tpu_custom_call.1} parent=5 // pred_region
        // Predicated region
        $region41: #{tpu_custom_call.1} parent=39 // pred_check
          %p312 = pneg %p39
        $region42: #{tpu_custom_call.1} parent=39 // pred_check_branch
          %314 = sbr.rel (%p312) target = $region44
        $region43: #{tpu_custom_call.1} parent=39 // pred_region
          %p315 = scmp.lt.s32.totalorder %s19, 1
          %s316 = scalar_select %p315, %s19, 1
          %s317 = smul.addr %s316, 8
          %s318 = scalar_lea.vmem %s0, %s317
        $region44: #{tpu_custom_call.1} parent=39 // pred_fallthru
          _
        // Predicated region
        $region45: #{tpu_custom_call.1} parent=39 // pred_check
          %p319 = pneg %p65
        $region46: #{tpu_custom_call.1} parent=39 // pred_check_branch
          %321 = sbr.rel (%p319) target = $region48
        $region47: #{tpu_custom_call.1} parent=39 // pred_region
          %p322 = scmp.lt.s32.totalorder %s19, 1
          %s323 = scalar_select %p322, %s19, 1
          %s324 = smul.addr %s323, 8
          %s325 = scalar_lea.vmem %s1, %s324
        $region48: #{tpu_custom_call.1} parent=39 // pred_fallthru
          _
        // Predicated region
        $region49: #{tpu_custom_call.1} parent=39 // pred_check
          %p326 = pneg %p91
        $region50: #{tpu_custom_call.1} parent=39 // pred_check_branch
          %328 = sbr.rel (%p326) target = $region52
        $region51: #{tpu_custom_call.1} parent=39 // pred_region
          %p329 = scmp.lt.s32.totalorder %s19, 1
          %s330 = scalar_select %p329, %s19, 1
          %s331 = smul.addr %s330, 8
          %s332 = scalar_lea.vmem %s2, %s331
        $region52: #{tpu_custom_call.1} parent=39 // pred_fallthru
          _
        // Predicated region
        $region53: #{tpu_custom_call.1} parent=39 // pred_check
          %p333 = pneg %p117
        $region54: #{tpu_custom_call.1} parent=39 // pred_check_branch
          %335 = sbr.rel (%p333) target = $region56
        $region55: #{tpu_custom_call.1} parent=39 // pred_region
          %p336 = scmp.lt.s32.totalorder %s19, 1
          %s337 = scalar_select %p336, %s19, 1
          %s338 = scalar_lea.vmem %s3, %s337
        $region56: #{tpu_custom_call.1} parent=39 // pred_fallthru
          _
      $region40: #{tpu_custom_call.1} parent=5 // pred_fallthru
        _
      %p339 = scmp.le.s32.totalorder 1, %s19
      %p340 = scmp.lt.s32.totalorder %s19, 3
      %p341 = pnand %p339, %p340
      %p342 = pneg %p341
      // Predicated region
      $region57: #{tpu_custom_call.1} parent=5 // pred_check
        _
      $region58: #{tpu_custom_call.1} parent=5 // pred_check_branch
        %344 = sbr.rel (%p341) target = $region60
      $region59: #{tpu_custom_call.1} parent=5 // pred_region
        %s345 = ssub.s32 %s19, 1
        %p346 = scmp.lt.s32.totalorder %s24, 1
        %s347 = scalar_select %p346, %s24, 1
        %s348 = smul.addr %s347, 8
        %s349 = scalar_lea.vmem %s0, %s348
        %p350 = pneg %p45
        %p351 = pneg %p42
        %p352 = scmp.lt.s32.totalorder %s24, 1
        %s353 = scalar_select %p352, %s24, 1
        %s354 = smul.addr %s353, 8
        %s355 = scalar_lea.vmem %s1, %s354
        %p356 = pneg %p71
        %p357 = pneg %p68
        %p358 = scmp.lt.s32.totalorder %s24, 1
        %s359 = scalar_select %p358, %s24, 1
        %s360 = smul.addr %s359, 8
        %s361 = scalar_lea.vmem %s2, %s360
        %p362 = pneg %p97
        %p363 = pneg %p94
        %p364 = scmp.lt.s32.totalorder %s24, 1
        %s365 = scalar_select %p364, %s24, 1
        %s366 = scalar_lea.vmem %s3, %s365
        %p367 = pneg %p123
        %p368 = pneg %p120
        %p369 = pneg %p144
        %p370 = pneg %p141
        %p371 = pneg %p165
        %p372 = pneg %p162
        %p373 = pneg %p186
        %p374 = pneg %p183
        %p375 = pneg %p207
        %p376 = pneg %p204
        %p377 = pneg %p228
        %p378 = pneg %p225
        %p379 = pneg %p249
        %p380 = pneg %p246
        %p381 = pneg %p275
        %p382 = pneg %p272
        %s383 = sand.u32 %s262, 1
        %s384 = scalar_lea.sflag [#allocation3], %s383
        %s385 = sand.u32 %s262, 1
        %s386 = smul.addr %s385, 8
        %s387 = scalar_lea.vmem [#allocation2], %s386
        %p388 = scmp.lt.s32.totalorder %s24, 1
        %s389 = scalar_select %p388, %s24, 1
        %s390 = smul.addr %s389, 8
        %s391 = scalar_lea.vmem %s0, %s390
        %p392 = scmp.lt.s32.totalorder %s24, 1
        %s393 = scalar_select %p392, %s24, 1
        %s394 = smul.addr %s393, 8
        %s395 = scalar_lea.vmem %s1, %s394
        %p396 = scmp.lt.s32.totalorder %s24, 1
        %s397 = scalar_select %p396, %s24, 1
        %s398 = smul.addr %s397, 8
        %s399 = scalar_lea.vmem %s2, %s398
        %p400 = scmp.lt.s32.totalorder %s24, 1
        %s401 = scalar_select %p400, %s24, 1
        %s402 = scalar_lea.vmem %s3, %s401
        %v403 = vld [vmem:[%s391] sm:$0xff]
        %v404 = vld [vmem:[%s395] sm:$0xff]
        %v405 = vld [vmem:[%s399] sm:$0xff]
        %v406 = vld [vmem:[%s8] sm:$0xf]
        %v407 = vld [vmem:[%s8 + $0x4] sm:$0xf]
        %v408 = vld [vmem:[%s8 + $0x8] sm:$0xf]
        %v409 = vld [vmem:[%s4] sm:$0xff]
        %v410 = vld [vmem:[%s4 + $0x8] sm:$0xff]
        %v411 = vld [vmem:[%s4 + $0x10] sm:$0xff]
        %v412 = vld [vmem:[%s4 + $0x18] sm:$0xff]
        %v413 = vlaneseq
        %v414 = vshrl.u32 %v413, 7
        %v415 = vsub.s32 0, %v414
        %v416 = vrot.slane %v406, %v415
        %vm417 = vcmask 261120
        %v419 = vsel %vm417, %v403, 0
        %421 = vmatprep.subr.mxu0 0.0
        %422 = vmatpush1.msra.mxu0 %v409
        %423 = vmatprep.subr.mxu0 0.0
        %424 = vmatpush1.msra.mxu0 %v410
        %425 = vmatprep.subr.mxu0 0.0
        %426 = vmatpush1.msra.mxu0 %v411
        %427 = vmatprep.subr.mxu0 0.0
        %428 = vmatpush1.msra.mxu0 %v412
        %429 = vmatprep.subr.mxu0 0.0
        %430 = vmatpush1.msra.mxu0 0.0
        %431 = vmatprep.subr.mxu0 0.0
        %432 = vmatpush1.msra.mxu0 0.0
        %433 = vmatprep.subr.mxu0 0.0
        %434 = vmatpush1.msra.mxu0 0.0
        %435 = vmatprep.subr.mxu0 0.0
        %436 = vmatpush1.msra.mxu0 0.0
        %437 = vmatprep.subr.mxu0 0.0
        %438 = vmatpush1.msra.mxu0 0.0
        %439 = vmatprep.subr.mxu0 0.0
        %440 = vmatpush1.msra.mxu0 0.0
        %441 = vmatprep.subr.mxu0 0.0
        %442 = vmatpush1.msra.mxu0 0.0
        %443 = vmatprep.subr.mxu0 0.0
        %444 = vmatpush1.msra.mxu0 0.0
        %445 = vmatprep.subr.mxu0 0.0
        %446 = vmatpush1.msra.mxu0 0.0
        %447 = vmatprep.subr.mxu0 0.0
        %448 = vmatpush1.msra.mxu0 0.0
        %449 = vmatprep.subr.mxu0 0.0
        %450 = vmatpush1.msra.mxu0 0.0
        %451 = vmatprep.subr.mxu0 0.0
        %452 = vmatpush1.msra.mxu0 0.0
        %453 = vmatprep.subr.mxu0 0.0
        %454 = vmatpush1.msra.mxu0 0.0
        %455 = vmatprep.subr.mxu0 0.0
        %456 = vmatpush1.msra.mxu0 0.0
        %457 = vmatprep.subr.mxu0 0.0
        %458 = vmatpush1.msra.mxu0 0.0
        %459 = vmatprep.subr.mxu0 0.0
        %460 = vmatpush1.msra.mxu0 0.0
        %461 = vmatprep.subr.mxu0 0.0
        %462 = vmatpush1.msra.mxu0 0.0
        %463 = vmatprep.subr.mxu0 0.0
        %464 = vmatpush1.msra.mxu0 0.0
        %465 = vmatprep.subr.mxu0 0.0
        %466 = vmatpush1.msra.mxu0 0.0
        %467 = vmatprep.subr.mxu0 0.0
        %468 = vmatpush1.msra.mxu0 0.0
        %469 = vmatprep.subr.mxu0 0.0
        %470 = vmatpush1.msra.mxu0 0.0
        %471 = vmatprep.subr.mxu0 0.0
        %472 = vmatpush1.msra.mxu0 0.0
        %473 = vmatprep.subr.mxu0 0.0
        %474 = vmatpush1.msra.mxu0 0.0
        %475 = vmatprep.subr.mxu0 0.0
        %476 = vmatpush1.msra.mxu0 0.0
        %477 = vmatprep.subr.mxu0 0.0
        %478 = vmatpush1.msra.mxu0 0.0
        %479 = vmatprep.subr.mxu0 0.0
        %480 = vmatpush1.msra.mxu0 0.0
        %481 = vmatprep.subr.mxu0 0.0
        %482 = vmatpush1.msra.mxu0 0.0
        %483 = vmatprep.subr.mxu0 0.0
        %484 = vmatpush1.msra.mxu0 0.0
        %485 = vmatprep.mubr.f32.mxu0 0.0
        %486 = vmatmul.mubr.f32.gmra.mrb[0].mxu0 %v419
        %v487 = vpop.f32.mrb[0].mxu0
        %v488 = vadd.f32 %v416, %v487
        %v489 = vpop.f32.mrb[0].mxu0
        %490 = vdwg.mxu0
        %v491 = vld [vmem:[%s5] sm:$0xff]
        %v492 = vld [vmem:[%s5 + $0x8] sm:$0xff]
        %v493 = vld [vmem:[%s5 + $0x10] sm:$0xff]
        %v494 = vld [vmem:[%s5 + $0x18] sm:$0xff]
        %v495 = vlaneseq
        %v496 = vshrl.u32 %v495, 7
        %v497 = vsub.s32 0, %v496
        %v498 = vrot.slane %v407, %v497
        %v500 = vsel %vm417, %v404, 0
        %502 = vmatprep.subr.mxu0 0.0
        %503 = vmatpush1.msra.mxu0 %v491
        %504 = vmatprep.subr.mxu0 0.0
        %505 = vmatpush1.msra.mxu0 %v492
        %506 = vmatprep.subr.mxu0 0.0
        %507 = vmatpush1.msra.mxu0 %v493
        %508 = vmatprep.subr.mxu0 0.0
        %509 = vmatpush1.msra.mxu0 %v494
        %510 = vmatprep.subr.mxu0 0.0
        %511 = vmatpush1.msra.mxu0 0.0
        %512 = vmatprep.subr.mxu0 0.0
        %513 = vmatpush1.msra.mxu0 0.0
        %514 = vmatprep.subr.mxu0 0.0
        %515 = vmatpush1.msra.mxu0 0.0
        %516 = vmatprep.subr.mxu0 0.0
        %517 = vmatpush1.msra.mxu0 0.0
        %518 = vmatprep.subr.mxu0 0.0
        %519 = vmatpush1.msra.mxu0 0.0
        %520 = vmatprep.subr.mxu0 0.0
        %521 = vmatpush1.msra.mxu0 0.0
        %522 = vmatprep.subr.mxu0 0.0
        %523 = vmatpush1.msra.mxu0 0.0
        %524 = vmatprep.subr.mxu0 0.0
        %525 = vmatpush1.msra.mxu0 0.0
        %526 = vmatprep.subr.mxu0 0.0
        %527 = vmatpush1.msra.mxu0 0.0
        %528 = vmatprep.subr.mxu0 0.0
        %529 = vmatpush1.msra.mxu0 0.0
        %530 = vmatprep.subr.mxu0 0.0
        %531 = vmatpush1.msra.mxu0 0.0
        %532 = vmatprep.subr.mxu0 0.0
        %533 = vmatpush1.msra.mxu0 0.0
        %534 = vmatprep.subr.mxu0 0.0
        %535 = vmatpush1.msra.mxu0 0.0
        %536 = vmatprep.subr.mxu0 0.0
        %537 = vmatpush1.msra.mxu0 0.0
        %538 = vmatprep.subr.mxu0 0.0
        %539 = vmatpush1.msra.mxu0 0.0
        %540 = vmatprep.subr.mxu0 0.0
        %541 = vmatpush1.msra.mxu0 0.0
        %542 = vmatprep.subr.mxu0 0.0
        %543 = vmatpush1.msra.mxu0 0.0
        %544 = vmatprep.subr.mxu0 0.0
        %545 = vmatpush1.msra.mxu0 0.0
        %546 = vmatprep.subr.mxu0 0.0
        %547 = vmatpush1.msra.mxu0 0.0
        %548 = vmatprep.subr.mxu0 0.0
        %549 = vmatpush1.msra.mxu0 0.0
        %550 = vmatprep.subr.mxu0 0.0
        %551 = vmatpush1.msra.mxu0 0.0
        %552 = vmatprep.subr.mxu0 0.0
        %553 = vmatpush1.msra.mxu0 0.0
        %554 = vmatprep.subr.mxu0 0.0
        %555 = vmatpush1.msra.mxu0 0.0
        %556 = vmatprep.subr.mxu0 0.0
        %557 = vmatpush1.msra.mxu0 0.0
        %558 = vmatprep.subr.mxu0 0.0
        %559 = vmatpush1.msra.mxu0 0.0
        %560 = vmatprep.subr.mxu0 0.0
        %561 = vmatpush1.msra.mxu0 0.0
        %562 = vmatprep.subr.mxu0 0.0
        %563 = vmatpush1.msra.mxu0 0.0
        %564 = vmatprep.subr.mxu0 0.0
        %565 = vmatpush1.msra.mxu0 0.0
        %566 = vmatprep.mubr.f32.mxu0 0.0
        %567 = vmatmul.mubr.f32.gmra.mrb[0].mxu0 %v500
        %v568 = vpop.f32.mrb[0].mxu0
        %v569 = vadd.f32 %v498, %v568
        %v570 = vpop.f32.mrb[0].mxu0
        %571 = vdwg.mxu0
        %v572 = vld [vmem:[%s6] sm:$0xff]
        %v573 = vld [vmem:[%s6 + $0x8] sm:$0xff]
        %v574 = vld [vmem:[%s6 + $0x10] sm:$0xff]
        %v575 = vld [vmem:[%s6 + $0x18] sm:$0xff]
        %v576 = vlaneseq
        %v577 = vshrl.u32 %v576, 7
        %v578 = vsub.s32 0, %v577
        %v579 = vrot.slane %v408, %v578
        %v581 = vsel %vm417, %v405, 0
        %583 = vmatprep.subr.mxu0 0.0
        %584 = vmatpush1.msra.mxu0 %v572
        %585 = vmatprep.subr.mxu0 0.0
        %586 = vmatpush1.msra.mxu0 %v573
        %587 = vmatprep.subr.mxu0 0.0
        %588 = vmatpush1.msra.mxu0 %v574
        %589 = vmatprep.subr.mxu0 0.0
        %590 = vmatpush1.msra.mxu0 %v575
        %591 = vmatprep.subr.mxu0 0.0
        %592 = vmatpush1.msra.mxu0 0.0
        %593 = vmatprep.subr.mxu0 0.0
        %594 = vmatpush1.msra.mxu0 0.0
        %595 = vmatprep.subr.mxu0 0.0
        %596 = vmatpush1.msra.mxu0 0.0
        %597 = vmatprep.subr.mxu0 0.0
        %598 = vmatpush1.msra.mxu0 0.0
        %599 = vmatprep.subr.mxu0 0.0
        %600 = vmatpush1.msra.mxu0 0.0
        %601 = vmatprep.subr.mxu0 0.0
        %602 = vmatpush1.msra.mxu0 0.0
        %603 = vmatprep.subr.mxu0 0.0
        %604 = vmatpush1.msra.mxu0 0.0
        %605 = vmatprep.subr.mxu0 0.0
        %606 = vmatpush1.msra.mxu0 0.0
        %607 = vmatprep.subr.mxu0 0.0
        %608 = vmatpush1.msra.mxu0 0.0
        %609 = vmatprep.subr.mxu0 0.0
        %610 = vmatpush1.msra.mxu0 0.0
        %611 = vmatprep.subr.mxu0 0.0
        %612 = vmatpush1.msra.mxu0 0.0
        %613 = vmatprep.subr.mxu0 0.0
        %614 = vmatpush1.msra.mxu0 0.0
        %615 = vmatprep.subr.mxu0 0.0
        %616 = vmatpush1.msra.mxu0 0.0
        %617 = vmatprep.subr.mxu0 0.0
        %618 = vmatpush1.msra.mxu0 0.0
        %619 = vmatprep.subr.mxu0 0.0
        %620 = vmatpush1.msra.mxu0 0.0
        %621 = vmatprep.subr.mxu0 0.0
        %622 = vmatpush1.msra.mxu0 0.0
        %623 = vmatprep.subr.mxu0 0.0
        %624 = vmatpush1.msra.mxu0 0.0
        %625 = vmatprep.subr.mxu0 0.0
        %626 = vmatpush1.msra.mxu0 0.0
        %627 = vmatprep.subr.mxu0 0.0
        %628 = vmatpush1.msra.mxu0 0.0
        %629 = vmatprep.subr.mxu0 0.0
        %630 = vmatpush1.msra.mxu0 0.0
        %631 = vmatprep.subr.mxu0 0.0
        %632 = vmatpush1.msra.mxu0 0.0
        %633 = vmatprep.subr.mxu0 0.0
        %634 = vmatpush1.msra.mxu0 0.0
        %635 = vmatprep.subr.mxu0 0.0
        %636 = vmatpush1.msra.mxu0 0.0
        %637 = vmatprep.subr.mxu0 0.0
        %638 = vmatpush1.msra.mxu0 0.0
        %639 = vmatprep.subr.mxu0 0.0
        %640 = vmatpush1.msra.mxu0 0.0
        %641 = vmatprep.subr.mxu0 0.0
        %642 = vmatpush1.msra.mxu0 0.0
        %643 = vmatprep.subr.mxu0 0.0
        %644 = vmatpush1.msra.mxu0 0.0
        %645 = vmatprep.subr.mxu0 0.0
        %646 = vmatpush1.msra.mxu0 0.0
        %647 = vmatprep.mubr.f32.mxu0 0.0
        %648 = vmatmul.mubr.f32.gmra.mrb[0].mxu0 %v581
        %v649 = vpop.f32.mrb[0].mxu0
        %v650 = vadd.f32 %v579, %v649
        %v651 = vpop.f32.mrb[0].mxu0
        %652 = vdwg.mxu0
        %vm653 = vcmask 64512
        %v655 = vsel %vm653, %v488, 0
        %v658 = vsel %vm653, %v569, 0
        %660 = vmatprep.subr.mxu0 0.0
        %661 = vmatpush1.xpose.msra.mxu0 %v658
        %662 = vmatprep.subr.mxu0 0.0
        %663 = vmatpush1.xpose.msra.mxu0 0.0
        %664 = vmatprep.subr.mxu0 0.0
        %665 = vmatpush1.xpose.msra.mxu0 0.0
        %666 = vmatprep.subr.mxu0 0.0
        %667 = vmatpush1.xpose.msra.mxu0 0.0
        %668 = vmatprep.subr.mxu0 0.0
        %669 = vmatpush1.xpose.msra.mxu0 0.0
        %670 = vmatprep.subr.mxu0 0.0
        %671 = vmatpush1.xpose.msra.mxu0 0.0
        %672 = vmatprep.subr.mxu0 0.0
        %673 = vmatpush1.xpose.msra.mxu0 0.0
        %674 = vmatprep.subr.mxu0 0.0
        %675 = vmatpush1.xpose.msra.mxu0 0.0
        %676 = vmatprep.subr.mxu0 0.0
        %677 = vmatpush1.xpose.msra.mxu0 0.0
        %678 = vmatprep.subr.mxu0 0.0
        %679 = vmatpush1.xpose.msra.mxu0 0.0
        %680 = vmatprep.subr.mxu0 0.0
        %681 = vmatpush1.xpose.msra.mxu0 0.0
        %682 = vmatprep.subr.mxu0 0.0
        %683 = vmatpush1.xpose.msra.mxu0 0.0
        %684 = vmatprep.subr.mxu0 0.0
        %685 = vmatpush1.xpose.msra.mxu0 0.0
        %686 = vmatprep.subr.mxu0 0.0
        %687 = vmatpush1.xpose.msra.mxu0 0.0
        %688 = vmatprep.subr.mxu0 0.0
        %689 = vmatpush1.xpose.msra.mxu0 0.0
        %690 = vmatprep.subr.mxu0 0.0
        %691 = vmatpush1.xpose.msra.mxu0 0.0
        %692 = vmatprep.subr.mxu0 0.0
        %693 = vmatpush1.xpose.msra.mxu0 0.0
        %694 = vmatprep.subr.mxu0 0.0
        %695 = vmatpush1.xpose.msra.mxu0 0.0
        %696 = vmatprep.subr.mxu0 0.0
        %697 = vmatpush1.xpose.msra.mxu0 0.0
        %698 = vmatprep.subr.mxu0 0.0
        %699 = vmatpush1.xpose.msra.mxu0 0.0
        %700 = vmatprep.subr.mxu0 0.0
        %701 = vmatpush1.xpose.msra.mxu0 0.0
        %702 = vmatprep.subr.mxu0 0.0
        %703 = vmatpush1.xpose.msra.mxu0 0.0
        %704 = vmatprep.subr.mxu0 0.0
        %705 = vmatpush1.xpose.msra.mxu0 0.0
        %706 = vmatprep.subr.mxu0 0.0
        %707 = vmatpush1.xpose.msra.mxu0 0.0
        %708 = vmatprep.subr.mxu0 0.0
        %709 = vmatpush1.xpose.msra.mxu0 0.0
        %710 = vmatprep.subr.mxu0 0.0
        %711 = vmatpush1.xpose.msra.mxu0 0.0
        %712 = vmatprep.subr.mxu0 0.0
        %713 = vmatpush1.xpose.msra.mxu0 0.0
        %714 = vmatprep.subr.mxu0 0.0
        %715 = vmatpush1.xpose.msra.mxu0 0.0
        %716 = vmatprep.subr.mxu0 0.0
        %717 = vmatpush1.xpose.msra.mxu0 0.0
        %718 = vmatprep.subr.mxu0 0.0
        %719 = vmatpush1.xpose.msra.mxu0 0.0
        %720 = vmatprep.subr.mxu0 0.0
        %721 = vmatpush1.xpose.msra.mxu0 0.0
        %722 = vmatprep.subr.mxu0 0.0
        %723 = vmatpush1.xpose.msra.mxu0 0.0
        %724 = vmatprep.mubr.f32.mxu0 0.0
        %725 = vmatmul.mubr.f32.gmra.mrb[0].mxu0 %v655
        %v726 = vpop.f32.mrb[0].mxu0
        %v727 = vadd.f32 0.0, %v726
        %v728 = vpop.f32.mrb[0].mxu0
        %729 = vdwg.mxu0
        %s730 = scalar_lea.vmem %s4, 32
        %v731 = vld [vmem:[%s730] sm:$0xff]
        %v732 = vld [vmem:[%s730 + $0x8] sm:$0xff]
        %v733 = vld [vmem:[%s730 + $0x10] sm:$0xff]
        %v734 = vld [vmem:[%s730 + $0x18] sm:$0xff]
        %v735 = vlaneseq
        %v736 = vshrl.u32 %v735, 7
        %v737 = vsub.s32 1, %v736
        %v738 = vrot.slane %v406, %v737
        %739 = vmatprep.subr.mxu0 0.0
        %740 = vmatpush1.msra.mxu0 %v731
        %741 = vmatprep.subr.mxu0 0.0
        %742 = vmatpush1.msra.mxu0 %v732
        %743 = vmatprep.subr.mxu0 0.0
        %744 = vmatpush1.msra.mxu0 %v733
        %745 = vmatprep.subr.mxu0 0.0
        %746 = vmatpush1.msra.mxu0 %v734
        %747 = vmatprep.subr.mxu0 0.0
        %748 = vmatpush1.msra.mxu0 0.0
        %749 = vmatprep.subr.mxu0 0.0
        %750 = vmatpush1.msra.mxu0 0.0
        %751 = vmatprep.subr.mxu0 0.0
        %752 = vmatpush1.msra.mxu0 0.0
        %753 = vmatprep.subr.mxu0 0.0
        %754 = vmatpush1.msra.mxu0 0.0
        %755 = vmatprep.subr.mxu0 0.0
        %756 = vmatpush1.msra.mxu0 0.0
        %757 = vmatprep.subr.mxu0 0.0
        %758 = vmatpush1.msra.mxu0 0.0
        %759 = vmatprep.subr.mxu0 0.0
        %760 = vmatpush1.msra.mxu0 0.0
        %761 = vmatprep.subr.mxu0 0.0
        %762 = vmatpush1.msra.mxu0 0.0
        %763 = vmatprep.subr.mxu0 0.0
        %764 = vmatpush1.msra.mxu0 0.0
        %765 = vmatprep.subr.mxu0 0.0
        %766 = vmatpush1.msra.mxu0 0.0
        %767 = vmatprep.subr.mxu0 0.0
        %768 = vmatpush1.msra.mxu0 0.0
        %769 = vmatprep.subr.mxu0 0.0
        %770 = vmatpush1.msra.mxu0 0.0
        %771 = vmatprep.subr.mxu0 0.0
        %772 = vmatpush1.msra.mxu0 0.0
        %773 = vmatprep.subr.mxu0 0.0
        %774 = vmatpush1.msra.mxu0 0.0
        %775 = vmatprep.subr.mxu0 0.0
        %776 = vmatpush1.msra.mxu0 0.0
        %777 = vmatprep.subr.mxu0 0.0
        %778 = vmatpush1.msra.mxu0 0.0
        %779 = vmatprep.subr.mxu0 0.0
        %780 = vmatpush1.msra.mxu0 0.0
        %781 = vmatprep.subr.mxu0 0.0
        %782 = vmatpush1.msra.mxu0 0.0
        %783 = vmatprep.subr.mxu0 0.0
        %784 = vmatpush1.msra.mxu0 0.0
        %785 = vmatprep.subr.mxu0 0.0
        %786 = vmatpush1.msra.mxu0 0.0
        %787 = vmatprep.subr.mxu0 0.0
        %788 = vmatpush1.msra.mxu0 0.0
        %789 = vmatprep.subr.mxu0 0.0
        %790 = vmatpush1.msra.mxu0 0.0
        %791 = vmatprep.subr.mxu0 0.0
        %792 = vmatpush1.msra.mxu0 0.0
        %793 = vmatprep.subr.mxu0 0.0
        %794 = vmatpush1.msra.mxu0 0.0
        %795 = vmatprep.subr.mxu0 0.0
        %796 = vmatpush1.msra.mxu0 0.0
        %797 = vmatprep.subr.mxu0 0.0
        %798 = vmatpush1.msra.mxu0 0.0
        %799 = vmatprep.subr.mxu0 0.0
        %800 = vmatpush1.msra.mxu0 0.0
        %801 = vmatprep.subr.mxu0 0.0
        %802 = vmatpush1.msra.mxu0 0.0
        %803 = vmatprep.mubr.f32.mxu0 0.0
        %804 = vmatmul.mubr.f32.gmra.mrb[0].mxu0 %v419
        %v805 = vpop.f32.mrb[0].mxu0
        %v806 = vadd.f32 %v738, %v805
        %v807 = vpop.f32.mrb[0].mxu0
        %808 = vdwg.mxu0
        %s809 = scalar_lea.vmem %s5, 32
        %v810 = vld [vmem:[%s809] sm:$0xff]
        %v811 = vld [vmem:[%s809 + $0x8] sm:$0xff]
        %v812 = vld [vmem:[%s809 + $0x10] sm:$0xff]
        %v813 = vld [vmem:[%s809 + $0x18] sm:$0xff]
        %v814 = vlaneseq
        %v815 = vshrl.u32 %v814, 7
        %v816 = vsub.s32 1, %v815
        %v817 = vrot.slane %v407, %v816
        %818 = vmatprep.subr.mxu0 0.0
        %819 = vmatpush1.msra.mxu0 %v810
        %820 = vmatprep.subr.mxu0 0.0
        %821 = vmatpush1.msra.mxu0 %v811
        %822 = vmatprep.subr.mxu0 0.0
        %823 = vmatpush1.msra.mxu0 %v812
        %824 = vmatprep.subr.mxu0 0.0
        %825 = vmatpush1.msra.mxu0 %v813
        %826 = vmatprep.subr.mxu0 0.0
        %827 = vmatpush1.msra.mxu0 0.0
        %828 = vmatprep.subr.mxu0 0.0
        %829 = vmatpush1.msra.mxu0 0.0
        %830 = vmatprep.subr.mxu0 0.0
        %831 = vmatpush1.msra.mxu0 0.0
        %832 = vmatprep.subr.mxu0 0.0
        %833 = vmatpush1.msra.mxu0 0.0
        %834 = vmatprep.subr.mxu0 0.0
        %835 = vmatpush1.msra.mxu0 0.0
        %836 = vmatprep.subr.mxu0 0.0
        %837 = vmatpush1.msra.mxu0 0.0
        %838 = vmatprep.subr.mxu0 0.0
        %839 = vmatpush1.msra.mxu0 0.0
        %840 = vmatprep.subr.mxu0 0.0
        %841 = vmatpush1.msra.mxu0 0.0
        %842 = vmatprep.subr.mxu0 0.0
        %843 = vmatpush1.msra.mxu0 0.0
        %844 = vmatprep.subr.mxu0 0.0
        %845 = vmatpush1.msra.mxu0 0.0
        %846 = vmatprep.subr.mxu0 0.0
        %847 = vmatpush1.msra.mxu0 0.0
        %848 = vmatprep.subr.mxu0 0.0
        %849 = vmatpush1.msra.mxu0 0.0
        %850 = vmatprep.subr.mxu0 0.0
        %851 = vmatpush1.msra.mxu0 0.0
        %852 = vmatprep.subr.mxu0 0.0
        %853 = vmatpush1.msra.mxu0 0.0
        %854 = vmatprep.subr.mxu0 0.0
        %855 = vmatpush1.msra.mxu0 0.0
        %856 = vmatprep.subr.mxu0 0.0
        %857 = vmatpush1.msra.mxu0 0.0
        %858 = vmatprep.subr.mxu0 0.0
        %859 = vmatpush1.msra.mxu0 0.0
        %860 = vmatprep.subr.mxu0 0.0
        %861 = vmatpush1.msra.mxu0 0.0
        %862 = vmatprep.subr.mxu0 0.0
        %863 = vmatpush1.msra.mxu0 0.0
        %864 = vmatprep.subr.mxu0 0.0
        %865 = vmatpush1.msra.mxu0 0.0
        %866 = vmatprep.subr.mxu0 0.0
        %867 = vmatpush1.msra.mxu0 0.0
        %868 = vmatprep.subr.mxu0 0.0
        %869 = vmatpush1.msra.mxu0 0.0
        %870 = vmatprep.subr.mxu0 0.0
        %871 = vmatpush1.msra.mxu0 0.0
        %872 = vmatprep.subr.mxu0 0.0
        %873 = vmatpush1.msra.mxu0 0.0
        %874 = vmatprep.subr.mxu0 0.0
        %875 = vmatpush1.msra.mxu0 0.0
        %876 = vmatprep.subr.mxu0 0.0
        %877 = vmatpush1.msra.mxu0 0.0
        %878 = vmatprep.subr.mxu0 0.0
        %879 = vmatpush1.msra.mxu0 0.0
        %880 = vmatprep.subr.mxu0 0.0
        %881 = vmatpush1.msra.mxu0 0.0
        %882 = vmatprep.mubr.f32.mxu0 0.0
        %883 = vmatmul.mubr.f32.gmra.mrb[0].mxu0 %v500
        %v884 = vpop.f32.mrb[0].mxu0
        %v885 = vadd.f32 %v817, %v884
        %v886 = vpop.f32.mrb[0].mxu0
        %887 = vdwg.mxu0
        %s888 = scalar_lea.vmem %s6, 32
        %v889 = vld [vmem:[%s888] sm:$0xff]
        %v890 = vld [vmem:[%s888 + $0x8] sm:$0xff]
        %v891 = vld [vmem:[%s888 + $0x10] sm:$0xff]
        %v892 = vld [vmem:[%s888 + $0x18] sm:$0xff]
        %v893 = vlaneseq
        %v894 = vshrl.u32 %v893, 7
        %v895 = vsub.s32 1, %v894
        %v896 = vrot.slane %v408, %v895
        %897 = vmatprep.subr.mxu0 0.0
        %898 = vmatpush1.msra.mxu0 %v889
        %899 = vmatprep.subr.mxu0 0.0
        %900 = vmatpush1.msra.mxu0 %v890
        %901 = vmatprep.subr.mxu0 0.0
        %902 = vmatpush1.msra.mxu0 %v891
        %903 = vmatprep.subr.mxu0 0.0
        %904 = vmatpush1.msra.mxu0 %v892
        %905 = vmatprep.subr.mxu0 0.0
        %906 = vmatpush1.msra.mxu0 0.0
        %907 = vmatprep.subr.mxu0 0.0
        %908 = vmatpush1.msra.mxu0 0.0
        %909 = vmatprep.subr.mxu0 0.0
        %910 = vmatpush1.msra.mxu0 0.0
        %911 = vmatprep.subr.mxu0 0.0
        %912 = vmatpush1.msra.mxu0 0.0
        %913 = vmatprep.subr.mxu0 0.0
        %914 = vmatpush1.msra.mxu0 0.0
        %915 = vmatprep.subr.mxu0 0.0
        %916 = vmatpush1.msra.mxu0 0.0
        %917 = vmatprep.subr.mxu0 0.0
        %918 = vmatpush1.msra.mxu0 0.0
        %919 = vmatprep.subr.mxu0 0.0
        %920 = vmatpush1.msra.mxu0 0.0
        %921 = vmatprep.subr.mxu0 0.0
        %922 = vmatpush1.msra.mxu0 0.0
        %923 = vmatprep.subr.mxu0 0.0
        %924 = vmatpush1.msra.mxu0 0.0
        %925 = vmatprep.subr.mxu0 0.0
        %926 = vmatpush1.msra.mxu0 0.0
        %927 = vmatprep.subr.mxu0 0.0
        %928 = vmatpush1.msra.mxu0 0.0
        %929 = vmatprep.subr.mxu0 0.0
        %930 = vmatpush1.msra.mxu0 0.0
        %931 = vmatprep.subr.mxu0 0.0
        %932 = vmatpush1.msra.mxu0 0.0
        %933 = vmatprep.subr.mxu0 0.0
        %934 = vmatpush1.msra.mxu0 0.0
        %935 = vmatprep.subr.mxu0 0.0
        %936 = vmatpush1.msra.mxu0 0.0
        %937 = vmatprep.subr.mxu0 0.0
        %938 = vmatpush1.msra.mxu0 0.0
        %939 = vmatprep.subr.mxu0 0.0
        %940 = vmatpush1.msra.mxu0 0.0
        %941 = vmatprep.subr.mxu0 0.0
        %942 = vmatpush1.msra.mxu0 0.0
        %943 = vmatprep.subr.mxu0 0.0
        %944 = vmatpush1.msra.mxu0 0.0
        %945 = vmatprep.subr.mxu0 0.0
        %946 = vmatpush1.msra.mxu0 0.0
        %947 = vmatprep.subr.mxu0 0.0
        %948 = vmatpush1.msra.mxu0 0.0
        %949 = vmatprep.subr.mxu0 0.0
        %950 = vmatpush1.msra.mxu0 0.0
        %951 = vmatprep.subr.mxu0 0.0
        %952 = vmatpush1.msra.mxu0 0.0
        %953 = vmatprep.subr.mxu0 0.0
        %954 = vmatpush1.msra.mxu0 0.0
        %955 = vmatprep.subr.mxu0 0.0
        %956 = vmatpush1.msra.mxu0 0.0
        %957 = vmatprep.subr.mxu0 0.0
        %958 = vmatpush1.msra.mxu0 0.0
        %959 = vmatprep.subr.mxu0 0.0
        %960 = vmatpush1.msra.mxu0 0.0
        %961 = vmatprep.mubr.f32.mxu0 0.0
        %962 = vmatmul.mubr.f32.gmra.mrb[0].mxu0 %v581
        %v963 = vpop.f32.mrb[0].mxu0
        %v964 = vadd.f32 %v896, %v963
        %v965 = vpop.f32.mrb[0].mxu0
        %966 = vdwg.mxu0
        %v968 = vsel %vm653, %v806, 0
        %v971 = vsel %vm653, %v885, 0
        %973 = vmatprep.subr.mxu0 0.0
        %974 = vmatpush1.xpose.msra.mxu0 %v971
        %975 = vmatprep.subr.mxu0 0.0
        %976 = vmatpush1.xpose.msra.mxu0 0.0
        %977 = vmatprep.subr.mxu0 0.0
        %978 = vmatpush1.xpose.msra.mxu0 0.0
        %979 = vmatprep.subr.mxu0 0.0
        %980 = vmatpush1.xpose.msra.mxu0 0.0
        %981 = vmatprep.subr.mxu0 0.0
        %982 = vmatpush1.xpose.msra.mxu0 0.0
        %983 = vmatprep.subr.mxu0 0.0
        %984 = vmatpush1.xpose.msra.mxu0 0.0
        %985 = vmatprep.subr.mxu0 0.0
        %986 = vmatpush1.xpose.msra.mxu0 0.0
        %987 = vmatprep.subr.mxu0 0.0
        %988 = vmatpush1.xpose.msra.mxu0 0.0
        %989 = vmatprep.subr.mxu0 0.0
        %990 = vmatpush1.xpose.msra.mxu0 0.0
        %991 = vmatprep.subr.mxu0 0.0
        %992 = vmatpush1.xpose.msra.mxu0 0.0
        %993 = vmatprep.subr.mxu0 0.0
        %994 = vmatpush1.xpose.msra.mxu0 0.0
        %995 = vmatprep.subr.mxu0 0.0
        %996 = vmatpush1.xpose.msra.mxu0 0.0
        %997 = vmatprep.subr.mxu0 0.0
        %998 = vmatpush1.xpose.msra.mxu0 0.0
        %999 = vmatprep.subr.mxu0 0.0
        %1000 = vmatpush1.xpose.msra.mxu0 0.0
        %1001 = vmatprep.subr.mxu0 0.0
        %1002 = vmatpush1.xpose.msra.mxu0 0.0
        %1003 = vmatprep.subr.mxu0 0.0
        %1004 = vmatpush1.xpose.msra.mxu0 0.0
        %1005 = vmatprep.subr.mxu0 0.0
        %1006 = vmatpush1.xpose.msra.mxu0 0.0
        %1007 = vmatprep.subr.mxu0 0.0
        %1008 = vmatpush1.xpose.msra.mxu0 0.0
        %1009 = vmatprep.subr.mxu0 0.0
        %1010 = vmatpush1.xpose.msra.mxu0 0.0
        %1011 = vmatprep.subr.mxu0 0.0
        %1012 = vmatpush1.xpose.msra.mxu0 0.0
        %1013 = vmatprep.subr.mxu0 0.0
        %1014 = vmatpush1.xpose.msra.mxu0 0.0
        %1015 = vmatprep.subr.mxu0 0.0
        %1016 = vmatpush1.xpose.msra.mxu0 0.0
        %1017 = vmatprep.subr.mxu0 0.0
        %1018 = vmatpush1.xpose.msra.mxu0 0.0
        %1019 = vmatprep.subr.mxu0 0.0
        %1020 = vmatpush1.xpose.msra.mxu0 0.0
        %1021 = vmatprep.subr.mxu0 0.0
        %1022 = vmatpush1.xpose.msra.mxu0 0.0
        %1023 = vmatprep.subr.mxu0 0.0
        %1024 = vmatpush1.xpose.msra.mxu0 0.0
        %1025 = vmatprep.subr.mxu0 0.0
        %1026 = vmatpush1.xpose.msra.mxu0 0.0
        %1027 = vmatprep.subr.mxu0 0.0
        %1028 = vmatpush1.xpose.msra.mxu0 0.0
        %1029 = vmatprep.subr.mxu0 0.0
        %1030 = vmatpush1.xpose.msra.mxu0 0.0
        %1031 = vmatprep.subr.mxu0 0.0
        %1032 = vmatpush1.xpose.msra.mxu0 0.0
        %1033 = vmatprep.subr.mxu0 0.0
        %1034 = vmatpush1.xpose.msra.mxu0 0.0
        %1035 = vmatprep.subr.mxu0 0.0
        %1036 = vmatpush1.xpose.msra.mxu0 0.0
        %1037 = vmatprep.mubr.f32.mxu0 0.0
        %1038 = vmatmul.mubr.f32.gmra.mrb[0].mxu0 %v968
        %v1039 = vpop.f32.mrb[0].mxu0
        %v1040 = vadd.f32 0.0, %v1039
        %v1041 = vpop.f32.mrb[0].mxu0
        %1042 = vdwg.mxu0
        %s1043 = scalar_lea.vmem %s4, 64
        %v1044 = vld [vmem:[%s1043] sm:$0xff]
        %v1045 = vld [vmem:[%s1043 + $0x8] sm:$0xff]
        %v1046 = vld [vmem:[%s1043 + $0x10] sm:$0xff]
        %v1047 = vld [vmem:[%s1043 + $0x18] sm:$0xff]
        %v1048 = vlaneseq
        %v1049 = vshrl.u32 %v1048, 7
        %v1050 = vsub.s32 2, %v1049
        %v1051 = vrot.slane %v406, %v1050
        %1052 = vmatprep.subr.mxu0 0.0
        %1053 = vmatpush1.msra.mxu0 %v1044
        %1054 = vmatprep.subr.mxu0 0.0
        %1055 = vmatpush1.msra.mxu0 %v1045
        %1056 = vmatprep.subr.mxu0 0.0
        %1057 = vmatpush1.msra.mxu0 %v1046
        %1058 = vmatprep.subr.mxu0 0.0
        %1059 = vmatpush1.msra.mxu0 %v1047
        %1060 = vmatprep.subr.mxu0 0.0
        %1061 = vmatpush1.msra.mxu0 0.0
        %1062 = vmatprep.subr.mxu0 0.0
        %1063 = vmatpush1.msra.mxu0 0.0
        %1064 = vmatprep.subr.mxu0 0.0
        %1065 = vmatpush1.msra.mxu0 0.0
        %1066 = vmatprep.subr.mxu0 0.0
        %1067 = vmatpush1.msra.mxu0 0.0
        %1068 = vmatprep.subr.mxu0 0.0
        %1069 = vmatpush1.msra.mxu0 0.0
        %1070 = vmatprep.subr.mxu0 0.0
        %1071 = vmatpush1.msra.mxu0 0.0
        %1072 = vmatprep.subr.mxu0 0.0
        %1073 = vmatpush1.msra.mxu0 0.0
        %1074 = vmatprep.subr.mxu0 0.0
        %1075 = vmatpush1.msra.mxu0 0.0
        %1076 = vmatprep.subr.mxu0 0.0
        %1077 = vmatpush1.msra.mxu0 0.0
        %1078 = vmatprep.subr.mxu0 0.0
        %1079 = vmatpush1.msra.mxu0 0.0
        %1080 = vmatprep.subr.mxu0 0.0
        %1081 = vmatpush1.msra.mxu0 0.0
        %1082 = vmatprep.subr.mxu0 0.0
        %1083 = vmatpush1.msra.mxu0 0.0
        %1084 = vmatprep.subr.mxu0 0.0
        %1085 = vmatpush1.msra.mxu0 0.0
        %1086 = vmatprep.subr.mxu0 0.0
        %1087 = vmatpush1.msra.mxu0 0.0
        %1088 = vmatprep.subr.mxu0 0.0
        %1089 = vmatpush1.msra.mxu0 0.0
        %1090 = vmatprep.subr.mxu0 0.0
        %1091 = vmatpush1.msra.mxu0 0.0
        %1092 = vmatprep.subr.mxu0 0.0
        %1093 = vmatpush1.msra.mxu0 0.0
        %1094 = vmatprep.subr.mxu0 0.0
        %1095 = vmatpush1.msra.mxu0 0.0
        %1096 = vmatprep.subr.mxu0 0.0
        %1097 = vmatpush1.msra.mxu0 0.0
        %1098 = vmatprep.subr.mxu0 0.0
        %1099 = vmatpush1.msra.mxu0 0.0
        %1100 = vmatprep.subr.mxu0 0.0
        %1101 = vmatpush1.msra.mxu0 0.0
        %1102 = vmatprep.subr.mxu0 0.0
        %1103 = vmatpush1.msra.mxu0 0.0
        %1104 = vmatprep.subr.mxu0 0.0
        %1105 = vmatpush1.msra.mxu0 0.0
        %1106 = vmatprep.subr.mxu0 0.0
        %1107 = vmatpush1.msra.mxu0 0.0
        %1108 = vmatprep.subr.mxu0 0.0
        %1109 = vmatpush1.msra.mxu0 0.0
        %1110 = vmatprep.subr.mxu0 0.0
        %1111 = vmatpush1.msra.mxu0 0.0
        %1112 = vmatprep.subr.mxu0 0.0
        %1113 = vmatpush1.msra.mxu0 0.0
        %1114 = vmatprep.subr.mxu0 0.0
        %1115 = vmatpush1.msra.mxu0 0.0
        %1116 = vmatprep.mubr.f32.mxu0 0.0
        %1117 = vmatmul.mubr.f32.gmra.mrb[0].mxu0 %v419
        %v1118 = vpop.f32.mrb[0].mxu0
        %v1119 = vadd.f32 %v1051, %v1118
        %v1120 = vpop.f32.mrb[0].mxu0
        %1121 = vdwg.mxu0
        %s1122 = scalar_lea.vmem %s5, 64
        %v1123 = vld [vmem:[%s1122] sm:$0xff]
        %v1124 = vld [vmem:[%s1122 + $0x8] sm:$0xff]
        %v1125 = vld [vmem:[%s1122 + $0x10] sm:$0xff]
        %v1126 = vld [vmem:[%s1122 + $0x18] sm:$0xff]
        %v1127 = vlaneseq
        %v1128 = vshrl.u32 %v1127, 7
        %v1129 = vsub.s32 2, %v1128
        %v1130 = vrot.slane %v407, %v1129
        %1131 = vmatprep.subr.mxu0 0.0
        %1132 = vmatpush1.msra.mxu0 %v1123
        %1133 = vmatprep.subr.mxu0 0.0
        %1134 = vmatpush1.msra.mxu0 %v1124
        %1135 = vmatprep.subr.mxu0 0.0
        %1136 = vmatpush1.msra.mxu0 %v1125
        %1137 = vmatprep.subr.mxu0 0.0
        %1138 = vmatpush1.msra.mxu0 %v1126
        %1139 = vmatprep.subr.mxu0 0.0
        %1140 = vmatpush1.msra.mxu0 0.0
        %1141 = vmatprep.subr.mxu0 0.0
        %1142 = vmatpush1.msra.mxu0 0.0
        %1143 = vmatprep.subr.mxu0 0.0
        %1144 = vmatpush1.msra.mxu0 0.0
        %1145 = vmatprep.subr.mxu0 0.0
        %1146 = vmatpush1.msra.mxu0 0.0
        %1147 = vmatprep.subr.mxu0 0.0
        %1148 = vmatpush1.msra.mxu0 0.0
        %1149 = vmatprep.subr.mxu0 0.0
        %1150 = vmatpush1.msra.mxu0 0.0
        %1151 = vmatprep.subr.mxu0 0.0
        %1152 = vmatpush1.msra.mxu0 0.0
        %1153 = vmatprep.subr.mxu0 0.0
        %1154 = vmatpush1.msra.mxu0 0.0
        %1155 = vmatprep.subr.mxu0 0.0
        %1156 = vmatpush1.msra.mxu0 0.0
        %1157 = vmatprep.subr.mxu0 0.0
        %1158 = vmatpush1.msra.mxu0 0.0
        %1159 = vmatprep.subr.mxu0 0.0
        %1160 = vmatpush1.msra.mxu0 0.0
        %1161 = vmatprep.subr.mxu0 0.0
        %1162 = vmatpush1.msra.mxu0 0.0
        %1163 = vmatprep.subr.mxu0 0.0
        %1164 = vmatpush1.msra.mxu0 0.0
        %1165 = vmatprep.subr.mxu0 0.0
        %1166 = vmatpush1.msra.mxu0 0.0
        %1167 = vmatprep.subr.mxu0 0.0
        %1168 = vmatpush1.msra.mxu0 0.0
        %1169 = vmatprep.subr.mxu0 0.0
        %1170 = vmatpush1.msra.mxu0 0.0
        %1171 = vmatprep.subr.mxu0 0.0
        %1172 = vmatpush1.msra.mxu0 0.0
        %1173 = vmatprep.subr.mxu0 0.0
        %1174 = vmatpush1.msra.mxu0 0.0
        %1175 = vmatprep.subr.mxu0 0.0
        %1176 = vmatpush1.msra.mxu0 0.0
        %1177 = vmatprep.subr.mxu0 0.0
        %1178 = vmatpush1.msra.mxu0 0.0
        %1179 = vmatprep.subr.mxu0 0.0
        %1180 = vmatpush1.msra.mxu0 0.0
        %1181 = vmatprep.subr.mxu0 0.0
        %1182 = vmatpush1.msra.mxu0 0.0
        %1183 = vmatprep.subr.mxu0 0.0
        %1184 = vmatpush1.msra.mxu0 0.0
        %1185 = vmatprep.subr.mxu0 0.0
        %1186 = vmatpush1.msra.mxu0 0.0
        %1187 = vmatprep.subr.mxu0 0.0
        %1188 = vmatpush1.msra.mxu0 0.0
        %1189 = vmatprep.subr.mxu0 0.0
        %1190 = vmatpush1.msra.mxu0 0.0
        %1191 = vmatprep.subr.mxu0 0.0
        %1192 = vmatpush1.msra.mxu0 0.0
        %1193 = vmatprep.subr.mxu0 0.0
        %1194 = vmatpush1.msra.mxu0 0.0
        %1195 = vmatprep.mubr.f32.mxu0 0.0
        %1196 = vmatmul.mubr.f32.gmra.mrb[0].mxu0 %v500
        %v1197 = vpop.f32.mrb[0].mxu0
        %v1198 = vadd.f32 %v1130, %v1197
        %v1199 = vpop.f32.mrb[0].mxu0
        %1200 = vdwg.mxu0
        %s1201 = scalar_lea.vmem %s6, 64
        %v1202 = vld [vmem:[%s1201] sm:$0xff]
        %v1203 = vld [vmem:[%s1201 + $0x8] sm:$0xff]
        %v1204 = vld [vmem:[%s1201 + $0x10] sm:$0xff]
        %v1205 = vld [vmem:[%s1201 + $0x18] sm:$0xff]
        %v1206 = vlaneseq
        %v1207 = vshrl.u32 %v1206, 7
        %v1208 = vsub.s32 2, %v1207
        %v1209 = vrot.slane %v408, %v1208
        %1210 = vmatprep.subr.mxu0 0.0
        %1211 = vmatpush1.msra.mxu0 %v1202
        %1212 = vmatprep.subr.mxu0 0.0
        %1213 = vmatpush1.msra.mxu0 %v1203
        %1214 = vmatprep.subr.mxu0 0.0
        %1215 = vmatpush1.msra.mxu0 %v1204
        %1216 = vmatprep.subr.mxu0 0.0
        %1217 = vmatpush1.msra.mxu0 %v1205
        %1218 = vmatprep.subr.mxu0 0.0
        %1219 = vmatpush1.msra.mxu0 0.0
        %1220 = vmatprep.subr.mxu0 0.0
        %1221 = vmatpush1.msra.mxu0 0.0
        %1222 = vmatprep.subr.mxu0 0.0
        %1223 = vmatpush1.msra.mxu0 0.0
        %1224 = vmatprep.subr.mxu0 0.0
        %1225 = vmatpush1.msra.mxu0 0.0
        %1226 = vmatprep.subr.mxu0 0.0
        %1227 = vmatpush1.msra.mxu0 0.0
        %1228 = vmatprep.subr.mxu0 0.0
        %1229 = vmatpush1.msra.mxu0 0.0
        %1230 = vmatprep.subr.mxu0 0.0
        %1231 = vmatpush1.msra.mxu0 0.0
        %1232 = vmatprep.subr.mxu0 0.0
        %1233 = vmatpush1.msra.mxu0 0.0
        %1234 = vmatprep.subr.mxu0 0.0
        %1235 = vmatpush1.msra.mxu0 0.0
        %1236 = vmatprep.subr.mxu0 0.0
        %1237 = vmatpush1.msra.mxu0 0.0
        %1238 = vmatprep.subr.mxu0 0.0
        %1239 = vmatpush1.msra.mxu0 0.0
        %1240 = vmatprep.subr.mxu0 0.0
        %1241 = vmatpush1.msra.mxu0 0.0
        %1242 = vmatprep.subr.mxu0 0.0
        %1243 = vmatpush1.msra.mxu0 0.0
        %1244 = vmatprep.subr.mxu0 0.0
        %1245 = vmatpush1.msra.mxu0 0.0
        %1246 = vmatprep.subr.mxu0 0.0
        %1247 = vmatpush1.msra.mxu0 0.0
        %1248 = vmatprep.subr.mxu0 0.0
        %1249 = vmatpush1.msra.mxu0 0.0
        %1250 = vmatprep.subr.mxu0 0.0
        %1251 = vmatpush1.msra.mxu0 0.0
        %1252 = vmatprep.subr.mxu0 0.0
        %1253 = vmatpush1.msra.mxu0 0.0
        %1254 = vmatprep.subr.mxu0 0.0
        %1255 = vmatpush1.msra.mxu0 0.0
        %1256 = vmatprep.subr.mxu0 0.0
        %1257 = vmatpush1.msra.mxu0 0.0
        %1258 = vmatprep.subr.mxu0 0.0
        %1259 = vmatpush1.msra.mxu0 0.0
        %1260 = vmatprep.subr.mxu0 0.0
        %1261 = vmatpush1.msra.mxu0 0.0
        %1262 = vmatprep.subr.mxu0 0.0
        %1263 = vmatpush1.msra.mxu0 0.0
        %1264 = vmatprep.subr.mxu0 0.0
        %1265 = vmatpush1.msra.mxu0 0.0
        %1266 = vmatprep.subr.mxu0 0.0
        %1267 = vmatpush1.msra.mxu0 0.0
        %1268 = vmatprep.subr.mxu0 0.0
        %1269 = vmatpush1.msra.mxu0 0.0
        %1270 = vmatprep.subr.mxu0 0.0
        %1271 = vmatpush1.msra.mxu0 0.0
        %1272 = vmatprep.subr.mxu0 0.0
        %1273 = vmatpush1.msra.mxu0 0.0
        %1274 = vmatprep.mubr.f32.mxu0 0.0
        %1275 = vmatmul.mubr.f32.gmra.mrb[0].mxu0 %v581
        %v1276 = vpop.f32.mrb[0].mxu0
        %v1277 = vadd.f32 %v1209, %v1276
        %v1278 = vpop.f32.mrb[0].mxu0
        %1279 = vdwg.mxu0
        %v1281 = vsel %vm653, %v1119, 0
        %v1284 = vsel %vm653, %v1198, 0
        %1286 = vmatprep.subr.mxu0 0.0
        %1287 = vmatpush1.xpose.msra.mxu0 %v1284
        %1288 = vmatprep.subr.mxu0 0.0
        %1289 = vmatpush1.xpose.msra.mxu0 0.0
        %1290 = vmatprep.subr.mxu0 0.0
        %1291 = vmatpush1.xpose.msra.mxu0 0.0
        %1292 = vmatprep.subr.mxu0 0.0
        %1293 = vmatpush1.xpose.msra.mxu0 0.0
        %1294 = vmatprep.subr.mxu0 0.0
        %1295 = vmatpush1.xpose.msra.mxu0 0.0
        %1296 = vmatprep.subr.mxu0 0.0
        %1297 = vmatpush1.xpose.msra.mxu0 0.0
        %1298 = vmatprep.subr.mxu0 0.0
        %1299 = vmatpush1.xpose.msra.mxu0 0.0
        %1300 = vmatprep.subr.mxu0 0.0
        %1301 = vmatpush1.xpose.msra.mxu0 0.0
        %1302 = vmatprep.subr.mxu0 0.0
        %1303 = vmatpush1.xpose.msra.mxu0 0.0
        %1304 = vmatprep.subr.mxu0 0.0
        %1305 = vmatpush1.xpose.msra.mxu0 0.0
        %1306 = vmatprep.subr.mxu0 0.0
        %1307 = vmatpush1.xpose.msra.mxu0 0.0
        %1308 = vmatprep.subr.mxu0 0.0
        %1309 = vmatpush1.xpose.msra.mxu0 0.0
        %1310 = vmatprep.subr.mxu0 0.0
        %1311 = vmatpush1.xpose.msra.mxu0 0.0
        %1312 = vmatprep.subr.mxu0 0.0
        %1313 = vmatpush1.xpose.msra.mxu0 0.0
        %1314 = vmatprep.subr.mxu0 0.0
        %1315 = vmatpush1.xpose.msra.mxu0 0.0
        %1316 = vmatprep.subr.mxu0 0.0
        %1317 = vmatpush1.xpose.msra.mxu0 0.0
        %1318 = vmatprep.subr.mxu0 0.0
        %1319 = vmatpush1.xpose.msra.mxu0 0.0
        %1320 = vmatprep.subr.mxu0 0.0
        %1321 = vmatpush1.xpose.msra.mxu0 0.0
        %1322 = vmatprep.subr.mxu0 0.0
        %1323 = vmatpush1.xpose.msra.mxu0 0.0
        %1324 = vmatprep.subr.mxu0 0.0
        %1325 = vmatpush1.xpose.msra.mxu0 0.0
        %1326 = vmatprep.subr.mxu0 0.0
        %1327 = vmatpush1.xpose.msra.mxu0 0.0
        %1328 = vmatprep.subr.mxu0 0.0
        %1329 = vmatpush1.xpose.msra.mxu0 0.0
        %1330 = vmatprep.subr.mxu0 0.0
        %1331 = vmatpush1.xpose.msra.mxu0 0.0
        %1332 = vmatprep.subr.mxu0 0.0
        %1333 = vmatpush1.xpose.msra.mxu0 0.0
        %1334 = vmatprep.subr.mxu0 0.0
        %1335 = vmatpush1.xpose.msra.mxu0 0.0
        %1336 = vmatprep.subr.mxu0 0.0
        %1337 = vmatpush1.xpose.msra.mxu0 0.0
        %1338 = vmatprep.subr.mxu0 0.0
        %1339 = vmatpush1.xpose.msra.mxu0 0.0
        %1340 = vmatprep.subr.mxu0 0.0
        %1341 = vmatpush1.xpose.msra.mxu0 0.0
        %1342 = vmatprep.subr.mxu0 0.0
        %1343 = vmatpush1.xpose.msra.mxu0 0.0
        %1344 = vmatprep.subr.mxu0 0.0
        %1345 = vmatpush1.xpose.msra.mxu0 0.0
        %1346 = vmatprep.subr.mxu0 0.0
        %1347 = vmatpush1.xpose.msra.mxu0 0.0
        %1348 = vmatprep.subr.mxu0 0.0
        %1349 = vmatpush1.xpose.msra.mxu0 0.0
        %1350 = vmatprep.mubr.f32.mxu0 0.0
        %1351 = vmatmul.mubr.f32.gmra.mrb[0].mxu0 %v1281
        %v1352 = vpop.f32.mrb[0].mxu0
        %v1353 = vadd.f32 0.0, %v1352
        %v1354 = vpop.f32.mrb[0].mxu0
        %1355 = vdwg.mxu0
        %s1356 = scalar_lea.vmem %s4, 96
        %v1357 = vld [vmem:[%s1356] sm:$0xff]
        %v1358 = vld [vmem:[%s1356 + $0x8] sm:$0xff]
        %v1359 = vld [vmem:[%s1356 + $0x10] sm:$0xff]
        %v1360 = vld [vmem:[%s1356 + $0x18] sm:$0xff]
        %v1361 = vlaneseq
        %v1362 = vshrl.u32 %v1361, 7
        %v1363 = vsub.s32 3, %v1362
        %v1364 = vrot.slane %v406, %v1363
        %1365 = vmatprep.subr.mxu0 0.0
        %1366 = vmatpush1.msra.mxu0 %v1357
        %1367 = vmatprep.subr.mxu0 0.0
        %1368 = vmatpush1.msra.mxu0 %v1358
        %1369 = vmatprep.subr.mxu0 0.0
        %1370 = vmatpush1.msra.mxu0 %v1359
        %1371 = vmatprep.subr.mxu0 0.0
        %1372 = vmatpush1.msra.mxu0 %v1360
        %1373 = vmatprep.subr.mxu0 0.0
        %1374 = vmatpush1.msra.mxu0 0.0
        %1375 = vmatprep.subr.mxu0 0.0
        %1376 = vmatpush1.msra.mxu0 0.0
        %1377 = vmatprep.subr.mxu0 0.0
        %1378 = vmatpush1.msra.mxu0 0.0
        %1379 = vmatprep.subr.mxu0 0.0
        %1380 = vmatpush1.msra.mxu0 0.0
        %1381 = vmatprep.subr.mxu0 0.0
        %1382 = vmatpush1.msra.mxu0 0.0
        %1383 = vmatprep.subr.mxu0 0.0
        %1384 = vmatpush1.msra.mxu0 0.0
        %1385 = vmatprep.subr.mxu0 0.0
        %1386 = vmatpush1.msra.mxu0 0.0
        %1387 = vmatprep.subr.mxu0 0.0
        %1388 = vmatpush1.msra.mxu0 0.0
        %1389 = vmatprep.subr.mxu0 0.0
        %1390 = vmatpush1.msra.mxu0 0.0
        %1391 = vmatprep.subr.mxu0 0.0
        %1392 = vmatpush1.msra.mxu0 0.0
        %1393 = vmatprep.subr.mxu0 0.0
        %1394 = vmatpush1.msra.mxu0 0.0
        %1395 = vmatprep.subr.mxu0 0.0
        %1396 = vmatpush1.msra.mxu0 0.0
        %1397 = vmatprep.subr.mxu0 0.0
        %1398 = vmatpush1.msra.mxu0 0.0
        %1399 = vmatprep.subr.mxu0 0.0
        %1400 = vmatpush1.msra.mxu0 0.0
        %1401 = vmatprep.subr.mxu0 0.0
        %1402 = vmatpush1.msra.mxu0 0.0
        %1403 = vmatprep.subr.mxu0 0.0
        %1404 = vmatpush1.msra.mxu0 0.0
        %1405 = vmatprep.subr.mxu0 0.0
        %1406 = vmatpush1.msra.mxu0 0.0
        %1407 = vmatprep.subr.mxu0 0.0
        %1408 = vmatpush1.msra.mxu0 0.0
        %1409 = vmatprep.subr.mxu0 0.0
        %1410 = vmatpush1.msra.mxu0 0.0
        %1411 = vmatprep.subr.mxu0 0.0
        %1412 = vmatpush1.msra.mxu0 0.0
        %1413 = vmatprep.subr.mxu0 0.0
        %1414 = vmatpush1.msra.mxu0 0.0
        %1415 = vmatprep.subr.mxu0 0.0
        %1416 = vmatpush1.msra.mxu0 0.0
        %1417 = vmatprep.subr.mxu0 0.0
        %1418 = vmatpush1.msra.mxu0 0.0
        %1419 = vmatprep.subr.mxu0 0.0
        %1420 = vmatpush1.msra.mxu0 0.0
        %1421 = vmatprep.subr.mxu0 0.0
        %1422 = vmatpush1.msra.mxu0 0.0
        %1423 = vmatprep.subr.mxu0 0.0
        %1424 = vmatpush1.msra.mxu0 0.0
        %1425 = vmatprep.subr.mxu0 0.0
        %1426 = vmatpush1.msra.mxu0 0.0
        %1427 = vmatprep.subr.mxu0 0.0
        %1428 = vmatpush1.msra.mxu0 0.0
        %1429 = vmatprep.mubr.f32.mxu0 0.0
        %1430 = vmatmul.mubr.f32.gmra.mrb[0].mxu0 %v419
        %v1431 = vpop.f32.mrb[0].mxu0
        %v1432 = vadd.f32 %v1364, %v1431
        %v1433 = vpop.f32.mrb[0].mxu0
        %1434 = vdwg.mxu0
        %s1435 = scalar_lea.vmem %s5, 96
        %v1436 = vld [vmem:[%s1435] sm:$0xff]
        %v1437 = vld [vmem:[%s1435 + $0x8] sm:$0xff]
        %v1438 = vld [vmem:[%s1435 + $0x10] sm:$0xff]
        %v1439 = vld [vmem:[%s1435 + $0x18] sm:$0xff]
        %v1440 = vlaneseq
        %v1441 = vshrl.u32 %v1440, 7
        %v1442 = vsub.s32 3, %v1441
        %v1443 = vrot.slane %v407, %v1442
        %1444 = vmatprep.subr.mxu0 0.0
        %1445 = vmatpush1.msra.mxu0 %v1436
        %1446 = vmatprep.subr.mxu0 0.0
        %1447 = vmatpush1.msra.mxu0 %v1437
        %1448 = vmatprep.subr.mxu0 0.0
        %1449 = vmatpush1.msra.mxu0 %v1438
        %1450 = vmatprep.subr.mxu0 0.0
        %1451 = vmatpush1.msra.mxu0 %v1439
        %1452 = vmatprep.subr.mxu0 0.0
        %1453 = vmatpush1.msra.mxu0 0.0
        %1454 = vmatprep.subr.mxu0 0.0
        %1455 = vmatpush1.msra.mxu0 0.0
        %1456 = vmatprep.subr.mxu0 0.0
        %1457 = vmatpush1.msra.mxu0 0.0
        %1458 = vmatprep.subr.mxu0 0.0
        %1459 = vmatpush1.msra.mxu0 0.0
        %1460 = vmatprep.subr.mxu0 0.0
        %1461 = vmatpush1.msra.mxu0 0.0
        %1462 = vmatprep.subr.mxu0 0.0
        %1463 = vmatpush1.msra.mxu0 0.0
        %1464 = vmatprep.subr.mxu0 0.0
        %1465 = vmatpush1.msra.mxu0 0.0
        %1466 = vmatprep.subr.mxu0 0.0
        %1467 = vmatpush1.msra.mxu0 0.0
        %1468 = vmatprep.subr.mxu0 0.0
        %1469 = vmatpush1.msra.mxu0 0.0
        %1470 = vmatprep.subr.mxu0 0.0
        %1471 = vmatpush1.msra.mxu0 0.0
        %1472 = vmatprep.subr.mxu0 0.0
        %1473 = vmatpush1.msra.mxu0 0.0
        %1474 = vmatprep.subr.mxu0 0.0
        %1475 = vmatpush1.msra.mxu0 0.0
        %1476 = vmatprep.subr.mxu0 0.0
        %1477 = vmatpush1.msra.mxu0 0.0
        %1478 = vmatprep.subr.mxu0 0.0
        %1479 = vmatpush1.msra.mxu0 0.0
        %1480 = vmatprep.subr.mxu0 0.0
        %1481 = vmatpush1.msra.mxu0 0.0
        %1482 = vmatprep.subr.mxu0 0.0
        %1483 = vmatpush1.msra.mxu0 0.0
        %1484 = vmatprep.subr.mxu0 0.0
        %1485 = vmatpush1.msra.mxu0 0.0
        %1486 = vmatprep.subr.mxu0 0.0
        %1487 = vmatpush1.msra.mxu0 0.0
        %1488 = vmatprep.subr.mxu0 0.0
        %1489 = vmatpush1.msra.mxu0 0.0
        %1490 = vmatprep.subr.mxu0 0.0
        %1491 = vmatpush1.msra.mxu0 0.0
        %1492 = vmatprep.subr.mxu0 0.0
        %1493 = vmatpush1.msra.mxu0 0.0
        %1494 = vmatprep.subr.mxu0 0.0
        %1495 = vmatpush1.msra.mxu0 0.0
        %1496 = vmatprep.subr.mxu0 0.0
        %1497 = vmatpush1.msra.mxu0 0.0
        %1498 = vmatprep.subr.mxu0 0.0
        %1499 = vmatpush1.msra.mxu0 0.0
        %1500 = vmatprep.subr.mxu0 0.0
        %1501 = vmatpush1.msra.mxu0 0.0
        %1502 = vmatprep.subr.mxu0 0.0
        %1503 = vmatpush1.msra.mxu0 0.0
        %1504 = vmatprep.subr.mxu0 0.0
        %1505 = vmatpush1.msra.mxu0 0.0
        %1506 = vmatprep.subr.mxu0 0.0
        %1507 = vmatpush1.msra.mxu0 0.0
        %1508 = vmatprep.mubr.f32.mxu0 0.0
        %1509 = vmatmul.mubr.f32.gmra.mrb[0].mxu0 %v500
        %v1510 = vpop.f32.mrb[0].mxu0
        %v1511 = vadd.f32 %v1443, %v1510
        %v1512 = vpop.f32.mrb[0].mxu0
        %1513 = vdwg.mxu0
        %s1514 = scalar_lea.vmem %s6, 96
        %v1515 = vld [vmem:[%s1514] sm:$0xff]
        %v1516 = vld [vmem:[%s1514 + $0x8] sm:$0xff]
        %v1517 = vld [vmem:[%s1514 + $0x10] sm:$0xff]
        %v1518 = vld [vmem:[%s1514 + $0x18] sm:$0xff]
        %v1519 = vlaneseq
        %v1520 = vshrl.u32 %v1519, 7
        %v1521 = vsub.s32 3, %v1520
        %v1522 = vrot.slane %v408, %v1521
        %1523 = vmatprep.subr.mxu0 0.0
        %1524 = vmatpush1.msra.mxu0 %v1515
        %1525 = vmatprep.subr.mxu0 0.0
        %1526 = vmatpush1.msra.mxu0 %v1516
        %1527 = vmatprep.subr.mxu0 0.0
        %1528 = vmatpush1.msra.mxu0 %v1517
        %1529 = vmatprep.subr.mxu0 0.0
        %1530 = vmatpush1.msra.mxu0 %v1518
        %1531 = vmatprep.subr.mxu0 0.0
        %1532 = vmatpush1.msra.mxu0 0.0
        %1533 = vmatprep.subr.mxu0 0.0
        %1534 = vmatpush1.msra.mxu0 0.0
        %1535 = vmatprep.subr.mxu0 0.0
        %1536 = vmatpush1.msra.mxu0 0.0
        %1537 = vmatprep.subr.mxu0 0.0
        %1538 = vmatpush1.msra.mxu0 0.0
        %1539 = vmatprep.subr.mxu0 0.0
        %1540 = vmatpush1.msra.mxu0 0.0
        %1541 = vmatprep.subr.mxu0 0.0
        %1542 = vmatpush1.msra.mxu0 0.0
        %1543 = vmatprep.subr.mxu0 0.0
        %1544 = vmatpush1.msra.mxu0 0.0
        %1545 = vmatprep.subr.mxu0 0.0
        %1546 = vmatpush1.msra.mxu0 0.0
        %1547 = vmatprep.subr.mxu0 0.0
        %1548 = vmatpush1.msra.mxu0 0.0
        %1549 = vmatprep.subr.mxu0 0.0
        %1550 = vmatpush1.msra.mxu0 0.0
        %1551 = vmatprep.subr.mxu0 0.0
        %1552 = vmatpush1.msra.mxu0 0.0
        %1553 = vmatprep.subr.mxu0 0.0
        %1554 = vmatpush1.msra.mxu0 0.0
        %1555 = vmatprep.subr.mxu0 0.0
        %1556 = vmatpush1.msra.mxu0 0.0
        %1557 = vmatprep.subr.mxu0 0.0
        %1558 = vmatpush1.msra.mxu0 0.0
        %1559 = vmatprep.subr.mxu0 0.0
        %1560 = vmatpush1.msra.mxu0 0.0
        %1561 = vmatprep.subr.mxu0 0.0
        %1562 = vmatpush1.msra.mxu0 0.0
        %1563 = vmatprep.subr.mxu0 0.0
        %1564 = vmatpush1.msra.mxu0 0.0
        %1565 = vmatprep.subr.mxu0 0.0
        %1566 = vmatpush1.msra.mxu0 0.0
        %1567 = vmatprep.subr.mxu0 0.0
        %1568 = vmatpush1.msra.mxu0 0.0
        %1569 = vmatprep.subr.mxu0 0.0
        %1570 = vmatpush1.msra.mxu0 0.0
        %1571 = vmatprep.subr.mxu0 0.0
        %1572 = vmatpush1.msra.mxu0 0.0
        %1573 = vmatprep.subr.mxu0 0.0
        %1574 = vmatpush1.msra.mxu0 0.0
        %1575 = vmatprep.subr.mxu0 0.0
        %1576 = vmatpush1.msra.mxu0 0.0
        %1577 = vmatprep.subr.mxu0 0.0
        %1578 = vmatpush1.msra.mxu0 0.0
        %1579 = vmatprep.subr.mxu0 0.0
        %1580 = vmatpush1.msra.mxu0 0.0
        %1581 = vmatprep.subr.mxu0 0.0
        %1582 = vmatpush1.msra.mxu0 0.0
        %1583 = vmatprep.subr.mxu0 0.0
        %1584 = vmatpush1.msra.mxu0 0.0
        %1585 = vmatprep.subr.mxu0 0.0
        %1586 = vmatpush1.msra.mxu0 0.0
        %1587 = vmatprep.mubr.f32.mxu0 0.0
        %1588 = vmatmul.mubr.f32.gmra.mrb[0].mxu0 %v581
        %v1589 = vpop.f32.mrb[0].mxu0
        %v1590 = vadd.f32 %v1522, %v1589
        %v1591 = vpop.f32.mrb[0].mxu0
        %1592 = vdwg.mxu0
        %v1594 = vsel %vm653, %v1432, 0
        %v1597 = vsel %vm653, %v1511, 0
        %1599 = vmatprep.subr.mxu0 0.0
        %1600 = vmatpush1.xpose.msra.mxu0 %v1597
        %1601 = vmatprep.subr.mxu0 0.0
        %1602 = vmatpush1.xpose.msra.mxu0 0.0
        %1603 = vmatprep.subr.mxu0 0.0
        %1604 = vmatpush1.xpose.msra.mxu0 0.0
        %1605 = vmatprep.subr.mxu0 0.0
        %1606 = vmatpush1.xpose.msra.mxu0 0.0
        %1607 = vmatprep.subr.mxu0 0.0
        %1608 = vmatpush1.xpose.msra.mxu0 0.0
        %1609 = vmatprep.subr.mxu0 0.0
        %1610 = vmatpush1.xpose.msra.mxu0 0.0
        %1611 = vmatprep.subr.mxu0 0.0
        %1612 = vmatpush1.xpose.msra.mxu0 0.0
        %1613 = vmatprep.subr.mxu0 0.0
        %1614 = vmatpush1.xpose.msra.mxu0 0.0
        %1615 = vmatprep.subr.mxu0 0.0
        %1616 = vmatpush1.xpose.msra.mxu0 0.0
        %1617 = vmatprep.subr.mxu0 0.0
        %1618 = vmatpush1.xpose.msra.mxu0 0.0
        %1619 = vmatprep.subr.mxu0 0.0
        %1620 = vmatpush1.xpose.msra.mxu0 0.0
        %1621 = vmatprep.subr.mxu0 0.0
        %1622 = vmatpush1.xpose.msra.mxu0 0.0
        %1623 = vmatprep.subr.mxu0 0.0
        %1624 = vmatpush1.xpose.msra.mxu0 0.0
        %1625 = vmatprep.subr.mxu0 0.0
        %1626 = vmatpush1.xpose.msra.mxu0 0.0
        %1627 = vmatprep.subr.mxu0 0.0
        %1628 = vmatpush1.xpose.msra.mxu0 0.0
        %1629 = vmatprep.subr.mxu0 0.0
        %1630 = vmatpush1.xpose.msra.mxu0 0.0
        %1631 = vmatprep.subr.mxu0 0.0
        %1632 = vmatpush1.xpose.msra.mxu0 0.0
        %1633 = vmatprep.subr.mxu0 0.0
        %1634 = vmatpush1.xpose.msra.mxu0 0.0
        %1635 = vmatprep.subr.mxu0 0.0
        %1636 = vmatpush1.xpose.msra.mxu0 0.0
        %1637 = vmatprep.subr.mxu0 0.0
        %1638 = vmatpush1.xpose.msra.mxu0 0.0
        %1639 = vmatprep.subr.mxu0 0.0
        %1640 = vmatpush1.xpose.msra.mxu0 0.0
        %1641 = vmatprep.subr.mxu0 0.0
        %1642 = vmatpush1.xpose.msra.mxu0 0.0
        %1643 = vmatprep.subr.mxu0 0.0
        %1644 = vmatpush1.xpose.msra.mxu0 0.0
        %1645 = vmatprep.subr.mxu0 0.0
        %1646 = vmatpush1.xpose.msra.mxu0 0.0
        %1647 = vmatprep.subr.mxu0 0.0
        %1648 = vmatpush1.xpose.msra.mxu0 0.0
        %1649 = vmatprep.subr.mxu0 0.0
        %1650 = vmatpush1.xpose.msra.mxu0 0.0
        %1651 = vmatprep.subr.mxu0 0.0
        %1652 = vmatpush1.xpose.msra.mxu0 0.0
        %1653 = vmatprep.subr.mxu0 0.0
        %1654 = vmatpush1.xpose.msra.mxu0 0.0
        %1655 = vmatprep.subr.mxu0 0.0
        %1656 = vmatpush1.xpose.msra.mxu0 0.0
        %1657 = vmatprep.subr.mxu0 0.0
        %1658 = vmatpush1.xpose.msra.mxu0 0.0
        %1659 = vmatprep.subr.mxu0 0.0
        %1660 = vmatpush1.xpose.msra.mxu0 0.0
        %1661 = vmatprep.subr.mxu0 0.0
        %1662 = vmatpush1.xpose.msra.mxu0 0.0
        %1663 = vmatprep.mubr.f32.mxu0 0.0
        %1664 = vmatmul.mubr.f32.gmra.mrb[0].mxu0 %v1594
        %v1665 = vpop.f32.mrb[0].mxu0
        %v1666 = vadd.f32 0.0, %v1665
        %v1667 = vpop.f32.mrb[0].mxu0
        %1668 = vdwg.mxu0
        %v1669 = vld [vmem:[%s402] sm:$0x1]
        %v1671 = vlaneseq
        %v1672 = vshrl.u32 %v1671, 7
        %v1673 = vsub.s32 0, %v1672
        %v1674 = vrot.slane %v1669, %v1673
        %v1676 = vadd.f32 %v727, %v1674
        %v1677 = vadd.f32 %v1040, %v1674
        %v1678 = vadd.f32 %v1353, %v1674
        %v1679 = vadd.f32 %v1666, %v1674
        %v1680 = vsel %vm653, %v1676, -inf
        %1681 = vmax.xlane.f32.xlu0 %v1680
        %v1682 = vpop.xlane.xlu0 %1681
        %v1683 = vsel %vm653, %v1677, -inf
        %1684 = vmax.xlane.f32.xlu0 %v1683
        %v1685 = vpop.xlane.xlu0 %1684
        %v1686 = vsel %vm653, %v1678, -inf
        %1687 = vmax.xlane.f32.xlu0 %v1686
        %v1688 = vpop.xlane.xlu0 %1687
        %v1689 = vsel %vm653, %v1679, -inf
        %1690 = vmax.xlane.f32.xlu0 %v1689
        %v1691 = vpop.xlane.xlu0 %1690
        %v1692 = vsub.f32 %v1676, %v1682
        %v1693 = vsub.f32 %v1677, %v1685
        %v1694 = vsub.f32 %v1678, %v1688
        %v1695 = vsub.f32 %v1679, %v1691
        %v1696 = vmul.f32 %v1692, 1.442695
        %v1697 = vpow.pop %v1696
        %v1698 = vmul.f32 %v1693, 1.442695
        %v1699 = vpow.pop %v1698
        %v1700 = vmul.f32 %v1694, 1.442695
        %v1701 = vpow.pop %v1700
        %v1702 = vmul.f32 %v1695, 1.442695
        %v1703 = vpow.pop %v1702
        %v1704 = vsel %vm653, %v1697, 0.0
        %1705 = vadd.xlane.f32.xlu0 %v1704
        %v1706 = vpop.xlane.xlu0 %1705
        %v1707 = vsel %vm653, %v1699, 0.0
        %1708 = vadd.xlane.f32.xlu0 %v1707
        %v1709 = vpop.xlane.xlu0 %1708
        %v1710 = vsel %vm653, %v1701, 0.0
        %1711 = vadd.xlane.f32.xlu0 %v1710
        %v1712 = vpop.xlane.xlu0 %1711
        %v1713 = vsel %vm653, %v1703, 0.0
        %1714 = vadd.xlane.f32.xlu0 %v1713
        %v1715 = vpop.xlane.xlu0 %1714
        %v1716 = vrcp.pop %v1706
        %v1717 = vrcp.pop %v1709
        %v1718 = vrcp.pop %v1712
        %v1719 = vrcp.pop %v1715
        %v1720 = vmul.f32 %v1697, %v1716
        %v1721 = vmul.f32 %v1699, %v1717
        %v1722 = vmul.f32 %v1701, %v1718
        %v1723 = vmul.f32 %v1703, %v1719
        %v1725 = vsel %vm653, %v1720, 0
        %1727 = vmatprep.subr.mxu0 0.0
        %1728 = vmatpush1.msra.mxu0 %v650
        %1729 = vmatprep.subr.mxu0 0.0
        %1730 = vmatpush1.msra.mxu0 0.0
        %1731 = vmatprep.subr.mxu0 0.0
        %1732 = vmatpush1.msra.mxu0 0.0
        %1733 = vmatprep.subr.mxu0 0.0
        %1734 = vmatpush1.msra.mxu0 0.0
        %1735 = vmatprep.subr.mxu0 0.0
        %1736 = vmatpush1.msra.mxu0 0.0
        %1737 = vmatprep.subr.mxu0 0.0
        %1738 = vmatpush1.msra.mxu0 0.0
        %1739 = vmatprep.subr.mxu0 0.0
        %1740 = vmatpush1.msra.mxu0 0.0
        %1741 = vmatprep.subr.mxu0 0.0
        %1742 = vmatpush1.msra.mxu0 0.0
        %1743 = vmatprep.subr.mxu0 0.0
        %1744 = vmatpush1.msra.mxu0 0.0
        %1745 = vmatprep.subr.mxu0 0.0
        %1746 = vmatpush1.msra.mxu0 0.0
        %1747 = vmatprep.subr.mxu0 0.0
        %1748 = vmatpush1.msra.mxu0 0.0
        %1749 = vmatprep.subr.mxu0 0.0
        %1750 = vmatpush1.msra.mxu0 0.0
        %1751 = vmatprep.subr.mxu0 0.0
        %1752 = vmatpush1.msra.mxu0 0.0
        %1753 = vmatprep.subr.mxu0 0.0
        %1754 = vmatpush1.msra.mxu0 0.0
        %1755 = vmatprep.subr.mxu0 0.0
        %1756 = vmatpush1.msra.mxu0 0.0
        %1757 = vmatprep.subr.mxu0 0.0
        %1758 = vmatpush1.msra.mxu0 0.0
        %1759 = vmatprep.subr.mxu0 0.0
        %1760 = vmatpush1.msra.mxu0 0.0
        %1761 = vmatprep.subr.mxu0 0.0
        %1762 = vmatpush1.msra.mxu0 0.0
        %1763 = vmatprep.subr.mxu0 0.0
        %1764 = vmatpush1.msra.mxu0 0.0
        %1765 = vmatprep.subr.mxu0 0.0
        %1766 = vmatpush1.msra.mxu0 0.0
        %1767 = vmatprep.subr.mxu0 0.0
        %1768 = vmatpush1.msra.mxu0 0.0
        %1769 = vmatprep.subr.mxu0 0.0
        %1770 = vmatpush1.msra.mxu0 0.0
        %1771 = vmatprep.subr.mxu0 0.0
        %1772 = vmatpush1.msra.mxu0 0.0
        %1773 = vmatprep.subr.mxu0 0.0
        %1774 = vmatpush1.msra.mxu0 0.0
        %1775 = vmatprep.subr.mxu0 0.0
        %1776 = vmatpush1.msra.mxu0 0.0
        %1777 = vmatprep.subr.mxu0 0.0
        %1778 = vmatpush1.msra.mxu0 0.0
        %1779 = vmatprep.subr.mxu0 0.0
        %1780 = vmatpush1.msra.mxu0 0.0
        %1781 = vmatprep.subr.mxu0 0.0
        %1782 = vmatpush1.msra.mxu0 0.0
        %1783 = vmatprep.subr.mxu0 0.0
        %1784 = vmatpush1.msra.mxu0 0.0
        %1785 = vmatprep.subr.mxu0 0.0
        %1786 = vmatpush1.msra.mxu0 0.0
        %1787 = vmatprep.subr.mxu0 0.0
        %1788 = vmatpush1.msra.mxu0 0.0
        %1789 = vmatprep.subr.mxu0 0.0
        %1790 = vmatpush1.msra.mxu0 0.0
        %1791 = vmatprep.mubr.f32.mxu0 0.0
        %1792 = vmatmul.mubr.f32.gmra.mrb[0].mxu0 %v1725
        %v1793 = vpop.f32.mrb[0].mxu0
        %v1794 = vadd.f32 0.0, %v1793
        %v1795 = vpop.f32.mrb[0].mxu0
        %1796 = vdwg.mxu0
        %v1797 = vld [vmem:[%s7] sm:$0xff]
        %v1799 = vsel %vm653, %v1721, 0
        %1801 = vmatprep.subr.mxu0 0.0
        %1802 = vmatpush1.msra.mxu0 %v964
        %1803 = vmatprep.subr.mxu0 0.0
        %1804 = vmatpush1.msra.mxu0 0.0
        %1805 = vmatprep.subr.mxu0 0.0
        %1806 = vmatpush1.msra.mxu0 0.0
        %1807 = vmatprep.subr.mxu0 0.0
        %1808 = vmatpush1.msra.mxu0 0.0
        %1809 = vmatprep.subr.mxu0 0.0
        %1810 = vmatpush1.msra.mxu0 0.0
        %1811 = vmatprep.subr.mxu0 0.0
        %1812 = vmatpush1.msra.mxu0 0.0
        %1813 = vmatprep.subr.mxu0 0.0
        %1814 = vmatpush1.msra.mxu0 0.0
        %1815 = vmatprep.subr.mxu0 0.0
        %1816 = vmatpush1.msra.mxu0 0.0
        %1817 = vmatprep.subr.mxu0 0.0
        %1818 = vmatpush1.msra.mxu0 0.0
        %1819 = vmatprep.subr.mxu0 0.0
        %1820 = vmatpush1.msra.mxu0 0.0
        %1821 = vmatprep.subr.mxu0 0.0
        %1822 = vmatpush1.msra.mxu0 0.0
        %1823 = vmatprep.subr.mxu0 0.0
        %1824 = vmatpush1.msra.mxu0 0.0
        %1825 = vmatprep.subr.mxu0 0.0
        %1826 = vmatpush1.msra.mxu0 0.0
        %1827 = vmatprep.subr.mxu0 0.0
        %1828 = vmatpush1.msra.mxu0 0.0
        %1829 = vmatprep.subr.mxu0 0.0
        %1830 = vmatpush1.msra.mxu0 0.0
        %1831 = vmatprep.subr.mxu0 0.0
        %1832 = vmatpush1.msra.mxu0 0.0
        %1833 = vmatprep.subr.mxu0 0.0
        %1834 = vmatpush1.msra.mxu0 0.0
        %1835 = vmatprep.subr.mxu0 0.0
        %1836 = vmatpush1.msra.mxu0 0.0
        %1837 = vmatprep.subr.mxu0 0.0
        %1838 = vmatpush1.msra.mxu0 0.0
        %1839 = vmatprep.subr.mxu0 0.0
        %1840 = vmatpush1.msra.mxu0 0.0
        %1841 = vmatprep.subr.mxu0 0.0
        %1842 = vmatpush1.msra.mxu0 0.0
        %1843 = vmatprep.subr.mxu0 0.0
        %1844 = vmatpush1.msra.mxu0 0.0
        %1845 = vmatprep.subr.mxu0 0.0
        %1846 = vmatpush1.msra.mxu0 0.0
        %1847 = vmatprep.subr.mxu0 0.0
        %1848 = vmatpush1.msra.mxu0 0.0
        %1849 = vmatprep.subr.mxu0 0.0
        %1850 = vmatpush1.msra.mxu0 0.0
        %1851 = vmatprep.subr.mxu0 0.0
        %1852 = vmatpush1.msra.mxu0 0.0
        %1853 = vmatprep.subr.mxu0 0.0
        %1854 = vmatpush1.msra.mxu0 0.0
        %1855 = vmatprep.subr.mxu0 0.0
        %1856 = vmatpush1.msra.mxu0 0.0
        %1857 = vmatprep.subr.mxu0 0.0
        %1858 = vmatpush1.msra.mxu0 0.0
        %1859 = vmatprep.subr.mxu0 0.0
        %1860 = vmatpush1.msra.mxu0 0.0
        %1861 = vmatprep.subr.mxu0 0.0
        %1862 = vmatpush1.msra.mxu0 0.0
        %1863 = vmatprep.subr.mxu0 0.0
        %1864 = vmatpush1.msra.mxu0 0.0
        %1865 = vmatprep.mubr.f32.mxu0 0.0
        %1866 = vmatmul.mubr.f32.gmra.mrb[0].mxu0 %v1799
        %v1867 = vpop.f32.mrb[0].mxu0
        %v1868 = vadd.f32 0.0, %v1867
        %v1869 = vpop.f32.mrb[0].mxu0
        %1870 = vdwg.mxu0
        %s1871 = scalar_lea.vmem %s7, 8
        %v1872 = vld [vmem:[%s1871] sm:$0xff]
        %v1874 = vsel %vm653, %v1868, 0
        %1876 = vmatprep.subr.mxu0 0.0
        %1877 = vmatpush1.msra.mxu0 %v1872
        %1878 = vmatprep.subr.mxu0 0.0
        %1879 = vmatpush1.msra.mxu0 0.0
        %1880 = vmatprep.subr.mxu0 0.0
        %1881 = vmatpush1.msra.mxu0 0.0
        %1882 = vmatprep.subr.mxu0 0.0
        %1883 = vmatpush1.msra.mxu0 0.0
        %1884 = vmatprep.subr.mxu0 0.0
        %1885 = vmatpush1.msra.mxu0 0.0
        %1886 = vmatprep.subr.mxu0 0.0
        %1887 = vmatpush1.msra.mxu0 0.0
        %1888 = vmatprep.subr.mxu0 0.0
        %1889 = vmatpush1.msra.mxu0 0.0
        %1890 = vmatprep.subr.mxu0 0.0
        %1891 = vmatpush1.msra.mxu0 0.0
        %1892 = vmatprep.subr.mxu0 0.0
        %1893 = vmatpush1.msra.mxu0 0.0
        %1894 = vmatprep.subr.mxu0 0.0
        %1895 = vmatpush1.msra.mxu0 0.0
        %1896 = vmatprep.subr.mxu0 0.0
        %1897 = vmatpush1.msra.mxu0 0.0
        %1898 = vmatprep.subr.mxu0 0.0
        %1899 = vmatpush1.msra.mxu0 0.0
        %1900 = vmatprep.subr.mxu0 0.0
        %1901 = vmatpush1.msra.mxu0 0.0
        %1902 = vmatprep.subr.mxu0 0.0
        %1903 = vmatpush1.msra.mxu0 0.0
        %1904 = vmatprep.subr.mxu0 0.0
        %1905 = vmatpush1.msra.mxu0 0.0
        %1906 = vmatprep.subr.mxu0 0.0
        %1907 = vmatpush1.msra.mxu0 0.0
        %1908 = vmatprep.subr.mxu0 0.0
        %1909 = vmatpush1.msra.mxu0 0.0
        %1910 = vmatprep.subr.mxu0 0.0
        %1911 = vmatpush1.msra.mxu0 0.0
        %1912 = vmatprep.subr.mxu0 0.0
        %1913 = vmatpush1.msra.mxu0 0.0
        %1914 = vmatprep.subr.mxu0 0.0
        %1915 = vmatpush1.msra.mxu0 0.0
        %1916 = vmatprep.subr.mxu0 0.0
        %1917 = vmatpush1.msra.mxu0 0.0
        %1918 = vmatprep.subr.mxu0 0.0
        %1919 = vmatpush1.msra.mxu0 0.0
        %1920 = vmatprep.subr.mxu0 0.0
        %1921 = vmatpush1.msra.mxu0 0.0
        %1922 = vmatprep.subr.mxu0 0.0
        %1923 = vmatpush1.msra.mxu0 0.0
        %1924 = vmatprep.subr.mxu0 0.0
        %1925 = vmatpush1.msra.mxu0 0.0
        %1926 = vmatprep.subr.mxu0 0.0
        %1927 = vmatpush1.msra.mxu0 0.0
        %1928 = vmatprep.subr.mxu0 0.0
        %1929 = vmatpush1.msra.mxu0 0.0
        %1930 = vmatprep.subr.mxu0 0.0
        %1931 = vmatpush1.msra.mxu0 0.0
        %1932 = vmatprep.subr.mxu0 0.0
        %1933 = vmatpush1.msra.mxu0 0.0
        %1934 = vmatprep.subr.mxu0 0.0
        %1935 = vmatpush1.msra.mxu0 0.0
        %1936 = vmatprep.subr.mxu0 0.0
        %1937 = vmatpush1.msra.mxu0 0.0
        %1938 = vmatprep.subr.mxu0 0.0
        %1939 = vmatpush1.msra.mxu0 0.0
        %1940 = vmatprep.mubr.f32.mxu0 0.0
        %1941 = vmatmul.mubr.f32.gmra.mrb[0].mxu0 %v1874
        %v1942 = vpop.f32.mrb[0].mxu0
        %v1943 = vadd.f32 0.0, %v1942
        %v1944 = vpop.f32.mrb[0].mxu0
        %1945 = vdwg.mxu0
        %v1947 = vsel %vm653, %v1794, 0
        %1949 = vmatprep.subr.mxu0 0.0
        %1950 = vmatpush1.msra.mxu0 %v1797
        %1951 = vmatprep.subr.mxu0 0.0
        %1952 = vmatpush1.msra.mxu0 0.0
        %1953 = vmatprep.subr.mxu0 0.0
        %1954 = vmatpush1.msra.mxu0 0.0
        %1955 = vmatprep.subr.mxu0 0.0
        %1956 = vmatpush1.msra.mxu0 0.0
        %1957 = vmatprep.subr.mxu0 0.0
        %1958 = vmatpush1.msra.mxu0 0.0
        %1959 = vmatprep.subr.mxu0 0.0
        %1960 = vmatpush1.msra.mxu0 0.0
        %1961 = vmatprep.subr.mxu0 0.0
        %1962 = vmatpush1.msra.mxu0 0.0
        %1963 = vmatprep.subr.mxu0 0.0
        %1964 = vmatpush1.msra.mxu0 0.0
        %1965 = vmatprep.subr.mxu0 0.0
        %1966 = vmatpush1.msra.mxu0 0.0
        %1967 = vmatprep.subr.mxu0 0.0
        %1968 = vmatpush1.msra.mxu0 0.0
        %1969 = vmatprep.subr.mxu0 0.0
        %1970 = vmatpush1.msra.mxu0 0.0
        %1971 = vmatprep.subr.mxu0 0.0
        %1972 = vmatpush1.msra.mxu0 0.0
        %1973 = vmatprep.subr.mxu0 0.0
        %1974 = vmatpush1.msra.mxu0 0.0
        %1975 = vmatprep.subr.mxu0 0.0
        %1976 = vmatpush1.msra.mxu0 0.0
        %1977 = vmatprep.subr.mxu0 0.0
        %1978 = vmatpush1.msra.mxu0 0.0
        %1979 = vmatprep.subr.mxu0 0.0
        %1980 = vmatpush1.msra.mxu0 0.0
        %1981 = vmatprep.subr.mxu0 0.0
        %1982 = vmatpush1.msra.mxu0 0.0
        %1983 = vmatprep.subr.mxu0 0.0
        %1984 = vmatpush1.msra.mxu0 0.0
        %1985 = vmatprep.subr.mxu0 0.0
        %1986 = vmatpush1.msra.mxu0 0.0
        %1987 = vmatprep.subr.mxu0 0.0
        %1988 = vmatpush1.msra.mxu0 0.0
        %1989 = vmatprep.subr.mxu0 0.0
        %1990 = vmatpush1.msra.mxu0 0.0
        %1991 = vmatprep.subr.mxu0 0.0
        %1992 = vmatpush1.msra.mxu0 0.0
        %1993 = vmatprep.subr.mxu0 0.0
        %1994 = vmatpush1.msra.mxu0 0.0
        %1995 = vmatprep.subr.mxu0 0.0
        %1996 = vmatpush1.msra.mxu0 0.0
        %1997 = vmatprep.subr.mxu0 0.0
        %1998 = vmatpush1.msra.mxu0 0.0
        %1999 = vmatprep.subr.mxu0 0.0
        %2000 = vmatpush1.msra.mxu0 0.0
        %2001 = vmatprep.subr.mxu0 0.0
        %2002 = vmatpush1.msra.mxu0 0.0
        %2003 = vmatprep.subr.mxu0 0.0
        %2004 = vmatpush1.msra.mxu0 0.0
        %2005 = vmatprep.subr.mxu0 0.0
        %2006 = vmatpush1.msra.mxu0 0.0
        %2007 = vmatprep.subr.mxu0 0.0
        %2008 = vmatpush1.msra.mxu0 0.0
        %2009 = vmatprep.subr.mxu0 0.0
        %2010 = vmatpush1.msra.mxu0 0.0
        %2011 = vmatprep.subr.mxu0 0.0
        %2012 = vmatpush1.msra.mxu0 0.0
        %2013 = vmatprep.mubr.f32.mxu0 0.0
        %2014 = vmatmul.mubr.f32.gmra.mrb[0].mxu0 %v1947
        %v2015 = vpop.f32.mrb[0].mxu0
        %v2016 = vadd.f32 %v1943, %v2015
        %v2017 = vpop.f32.mrb[0].mxu0
        %2018 = vdwg.mxu0
        %v2020 = vsel %vm653, %v1722, 0
        %2022 = vmatprep.subr.mxu0 0.0
        %2023 = vmatpush1.msra.mxu0 %v1277
        %2024 = vmatprep.subr.mxu0 0.0
        %2025 = vmatpush1.msra.mxu0 0.0
        %2026 = vmatprep.subr.mxu0 0.0
        %2027 = vmatpush1.msra.mxu0 0.0
        %2028 = vmatprep.subr.mxu0 0.0
        %2029 = vmatpush1.msra.mxu0 0.0
        %2030 = vmatprep.subr.mxu0 0.0
        %2031 = vmatpush1.msra.mxu0 0.0
        %2032 = vmatprep.subr.mxu0 0.0
        %2033 = vmatpush1.msra.mxu0 0.0
        %2034 = vmatprep.subr.mxu0 0.0
        %2035 = vmatpush1.msra.mxu0 0.0
        %2036 = vmatprep.subr.mxu0 0.0
        %2037 = vmatpush1.msra.mxu0 0.0
        %2038 = vmatprep.subr.mxu0 0.0
        %2039 = vmatpush1.msra.mxu0 0.0
        %2040 = vmatprep.subr.mxu0 0.0
        %2041 = vmatpush1.msra.mxu0 0.0
        %2042 = vmatprep.subr.mxu0 0.0
        %2043 = vmatpush1.msra.mxu0 0.0
        %2044 = vmatprep.subr.mxu0 0.0
        %2045 = vmatpush1.msra.mxu0 0.0
        %2046 = vmatprep.subr.mxu0 0.0
        %2047 = vmatpush1.msra.mxu0 0.0
        %2048 = vmatprep.subr.mxu0 0.0
        %2049 = vmatpush1.msra.mxu0 0.0
        %2050 = vmatprep.subr.mxu0 0.0
        %2051 = vmatpush1.msra.mxu0 0.0
        %2052 = vmatprep.subr.mxu0 0.0
        %2053 = vmatpush1.msra.mxu0 0.0
        %2054 = vmatprep.subr.mxu0 0.0
        %2055 = vmatpush1.msra.mxu0 0.0
        %2056 = vmatprep.subr.mxu0 0.0
        %2057 = vmatpush1.msra.mxu0 0.0
        %2058 = vmatprep.subr.mxu0 0.0
        %2059 = vmatpush1.msra.mxu0 0.0
        %2060 = vmatprep.subr.mxu0 0.0
        %2061 = vmatpush1.msra.mxu0 0.0
        %2062 = vmatprep.subr.mxu0 0.0
        %2063 = vmatpush1.msra.mxu0 0.0
        %2064 = vmatprep.subr.mxu0 0.0
        %2065 = vmatpush1.msra.mxu0 0.0
        %2066 = vmatprep.subr.mxu0 0.0
        %2067 = vmatpush1.msra.mxu0 0.0
        %2068 = vmatprep.subr.mxu0 0.0
        %2069 = vmatpush1.msra.mxu0 0.0
        %2070 = vmatprep.subr.mxu0 0.0
        %2071 = vmatpush1.msra.mxu0 0.0
        %2072 = vmatprep.subr.mxu0 0.0
        %2073 = vmatpush1.msra.mxu0 0.0
        %2074 = vmatprep.subr.mxu0 0.0
        %2075 = vmatpush1.msra.mxu0 0.0
        %2076 = vmatprep.subr.mxu0 0.0
        %2077 = vmatpush1.msra.mxu0 0.0
        %2078 = vmatprep.subr.mxu0 0.0
        %2079 = vmatpush1.msra.mxu0 0.0
        %2080 = vmatprep.subr.mxu0 0.0
        %2081 = vmatpush1.msra.mxu0 0.0
        %2082 = vmatprep.subr.mxu0 0.0
        %2083 = vmatpush1.msra.mxu0 0.0
        %2084 = vmatprep.subr.mxu0 0.0
        %2085 = vmatpush1.msra.mxu0 0.0
        %2086 = vmatprep.mubr.f32.mxu0 0.0
        %2087 = vmatmul.mubr.f32.gmra.mrb[0].mxu0 %v2020
        %v2088 = vpop.f32.mrb[0].mxu0
        %v2089 = vadd.f32 0.0, %v2088
        %v2090 = vpop.f32.mrb[0].mxu0
        %2091 = vdwg.mxu0
        %s2092 = scalar_lea.vmem %s7, 16
        %v2093 = vld [vmem:[%s2092] sm:$0xff]
        %v2095 = vsel %vm653, %v2089, 0
        %2097 = vmatprep.subr.mxu0 0.0
        %2098 = vmatpush1.msra.mxu0 %v2093
        %2099 = vmatprep.subr.mxu0 0.0
        %2100 = vmatpush1.msra.mxu0 0.0
        %2101 = vmatprep.subr.mxu0 0.0
        %2102 = vmatpush1.msra.mxu0 0.0
        %2103 = vmatprep.subr.mxu0 0.0
        %2104 = vmatpush1.msra.mxu0 0.0
        %2105 = vmatprep.subr.mxu0 0.0
        %2106 = vmatpush1.msra.mxu0 0.0
        %2107 = vmatprep.subr.mxu0 0.0
        %2108 = vmatpush1.msra.mxu0 0.0
        %2109 = vmatprep.subr.mxu0 0.0
        %2110 = vmatpush1.msra.mxu0 0.0
        %2111 = vmatprep.subr.mxu0 0.0
        %2112 = vmatpush1.msra.mxu0 0.0
        %2113 = vmatprep.subr.mxu0 0.0
        %2114 = vmatpush1.msra.mxu0 0.0
        %2115 = vmatprep.subr.mxu0 0.0
        %2116 = vmatpush1.msra.mxu0 0.0
        %2117 = vmatprep.subr.mxu0 0.0
        %2118 = vmatpush1.msra.mxu0 0.0
        %2119 = vmatprep.subr.mxu0 0.0
        %2120 = vmatpush1.msra.mxu0 0.0
        %2121 = vmatprep.subr.mxu0 0.0
        %2122 = vmatpush1.msra.mxu0 0.0
        %2123 = vmatprep.subr.mxu0 0.0
        %2124 = vmatpush1.msra.mxu0 0.0
        %2125 = vmatprep.subr.mxu0 0.0
        %2126 = vmatpush1.msra.mxu0 0.0
        %2127 = vmatprep.subr.mxu0 0.0
        %2128 = vmatpush1.msra.mxu0 0.0
        %2129 = vmatprep.subr.mxu0 0.0
        %2130 = vmatpush1.msra.mxu0 0.0
        %2131 = vmatprep.subr.mxu0 0.0
        %2132 = vmatpush1.msra.mxu0 0.0
        %2133 = vmatprep.subr.mxu0 0.0
        %2134 = vmatpush1.msra.mxu0 0.0
        %2135 = vmatprep.subr.mxu0 0.0
        %2136 = vmatpush1.msra.mxu0 0.0
        %2137 = vmatprep.subr.mxu0 0.0
        %2138 = vmatpush1.msra.mxu0 0.0
        %2139 = vmatprep.subr.mxu0 0.0
        %2140 = vmatpush1.msra.mxu0 0.0
        %2141 = vmatprep.subr.mxu0 0.0
        %2142 = vmatpush1.msra.mxu0 0.0
        %2143 = vmatprep.subr.mxu0 0.0
        %2144 = vmatpush1.msra.mxu0 0.0
        %2145 = vmatprep.subr.mxu0 0.0
        %2146 = vmatpush1.msra.mxu0 0.0
        %2147 = vmatprep.subr.mxu0 0.0
        %2148 = vmatpush1.msra.mxu0 0.0
        %2149 = vmatprep.subr.mxu0 0.0
        %2150 = vmatpush1.msra.mxu0 0.0
        %2151 = vmatprep.subr.mxu0 0.0
        %2152 = vmatpush1.msra.mxu0 0.0
        %2153 = vmatprep.subr.mxu0 0.0
        %2154 = vmatpush1.msra.mxu0 0.0
        %2155 = vmatprep.subr.mxu0 0.0
        %2156 = vmatpush1.msra.mxu0 0.0
        %2157 = vmatprep.subr.mxu0 0.0
        %2158 = vmatpush1.msra.mxu0 0.0
        %2159 = vmatprep.subr.mxu0 0.0
        %2160 = vmatpush1.msra.mxu0 0.0
        %2161 = vmatprep.mubr.f32.mxu0 0.0
        %2162 = vmatmul.mubr.f32.gmra.mrb[0].mxu0 %v2095
        %v2163 = vpop.f32.mrb[0].mxu0
        %v2164 = vadd.f32 0.0, %v2163
        %v2165 = vpop.f32.mrb[0].mxu0
        %2166 = vdwg.mxu0
        %v2167 = vadd.f32 %v2016, %v2164
        %v2169 = vsel %vm653, %v1723, 0
        %2171 = vmatprep.subr.mxu0 0.0
        %2172 = vmatpush1.msra.mxu0 %v1590
        %2173 = vmatprep.subr.mxu0 0.0
        %2174 = vmatpush1.msra.mxu0 0.0
        %2175 = vmatprep.subr.mxu0 0.0
        %2176 = vmatpush1.msra.mxu0 0.0
        %2177 = vmatprep.subr.mxu0 0.0
        %2178 = vmatpush1.msra.mxu0 0.0
        %2179 = vmatprep.subr.mxu0 0.0
        %2180 = vmatpush1.msra.mxu0 0.0
        %2181 = vmatprep.subr.mxu0 0.0
        %2182 = vmatpush1.msra.mxu0 0.0
        %2183 = vmatprep.subr.mxu0 0.0
        %2184 = vmatpush1.msra.mxu0 0.0
        %2185 = vmatprep.subr.mxu0 0.0
        %2186 = vmatpush1.msra.mxu0 0.0
        %2187 = vmatprep.subr.mxu0 0.0
        %2188 = vmatpush1.msra.mxu0 0.0
        %2189 = vmatprep.subr.mxu0 0.0
        %2190 = vmatpush1.msra.mxu0 0.0
        %2191 = vmatprep.subr.mxu0 0.0
        %2192 = vmatpush1.msra.mxu0 0.0
        %2193 = vmatprep.subr.mxu0 0.0
        %2194 = vmatpush1.msra.mxu0 0.0
        %2195 = vmatprep.subr.mxu0 0.0
        %2196 = vmatpush1.msra.mxu0 0.0
        %2197 = vmatprep.subr.mxu0 0.0
        %2198 = vmatpush1.msra.mxu0 0.0
        %2199 = vmatprep.subr.mxu0 0.0
        %2200 = vmatpush1.msra.mxu0 0.0
        %2201 = vmatprep.subr.mxu0 0.0
        %2202 = vmatpush1.msra.mxu0 0.0
        %2203 = vmatprep.subr.mxu0 0.0
        %2204 = vmatpush1.msra.mxu0 0.0
        %2205 = vmatprep.subr.mxu0 0.0
        %2206 = vmatpush1.msra.mxu0 0.0
        %2207 = vmatprep.subr.mxu0 0.0
        %2208 = vmatpush1.msra.mxu0 0.0
        %2209 = vmatprep.subr.mxu0 0.0
        %2210 = vmatpush1.msra.mxu0 0.0
        %2211 = vmatprep.subr.mxu0 0.0
        %2212 = vmatpush1.msra.mxu0 0.0
        %2213 = vmatprep.subr.mxu0 0.0
        %2214 = vmatpush1.msra.mxu0 0.0
        %2215 = vmatprep.subr.mxu0 0.0
        %2216 = vmatpush1.msra.mxu0 0.0
        %2217 = vmatprep.subr.mxu0 0.0
        %2218 = vmatpush1.msra.mxu0 0.0
        %2219 = vmatprep.subr.mxu0 0.0
        %2220 = vmatpush1.msra.mxu0 0.0
        %2221 = vmatprep.subr.mxu0 0.0
        %2222 = vmatpush1.msra.mxu0 0.0
        %2223 = vmatprep.subr.mxu0 0.0
        %2224 = vmatpush1.msra.mxu0 0.0
        %2225 = vmatprep.subr.mxu0 0.0
        %2226 = vmatpush1.msra.mxu0 0.0
        %2227 = vmatprep.subr.mxu0 0.0
        %2228 = vmatpush1.msra.mxu0 0.0
        %2229 = vmatprep.subr.mxu0 0.0
        %2230 = vmatpush1.msra.mxu0 0.0
        %2231 = vmatprep.subr.mxu0 0.0
        %2232 = vmatpush1.msra.mxu0 0.0
        %2233 = vmatprep.subr.mxu0 0.0
        %2234 = vmatpush1.msra.mxu0 0.0
        %2235 = vmatprep.mubr.f32.mxu0 0.0
        %2236 = vmatmul.mubr.f32.gmra.mrb[0].mxu0 %v2169
        %v2237 = vpop.f32.mrb[0].mxu0
        %v2238 = vadd.f32 0.0, %v2237
        %v2239 = vpop.f32.mrb[0].mxu0
        %2240 = vdwg.mxu0
        %s2241 = scalar_lea.vmem %s7, 24
        %v2242 = vld [vmem:[%s2241] sm:$0xff]
        %v2244 = vsel %vm653, %v2238, 0
        %2246 = vmatprep.subr.mxu0 0.0
        %2247 = vmatpush1.msra.mxu0 %v2242
        %2248 = vmatprep.subr.mxu0 0.0
        %2249 = vmatpush1.msra.mxu0 0.0
        %2250 = vmatprep.subr.mxu0 0.0
        %2251 = vmatpush1.msra.mxu0 0.0
        %2252 = vmatprep.subr.mxu0 0.0
        %2253 = vmatpush1.msra.mxu0 0.0
        %2254 = vmatprep.subr.mxu0 0.0
        %2255 = vmatpush1.msra.mxu0 0.0
        %2256 = vmatprep.subr.mxu0 0.0
        %2257 = vmatpush1.msra.mxu0 0.0
        %2258 = vmatprep.subr.mxu0 0.0
        %2259 = vmatpush1.msra.mxu0 0.0
        %2260 = vmatprep.subr.mxu0 0.0
        %2261 = vmatpush1.msra.mxu0 0.0
        %2262 = vmatprep.subr.mxu0 0.0
        %2263 = vmatpush1.msra.mxu0 0.0
        %2264 = vmatprep.subr.mxu0 0.0
        %2265 = vmatpush1.msra.mxu0 0.0
        %2266 = vmatprep.subr.mxu0 0.0
        %2267 = vmatpush1.msra.mxu0 0.0
        %2268 = vmatprep.subr.mxu0 0.0
        %2269 = vmatpush1.msra.mxu0 0.0
        %2270 = vmatprep.subr.mxu0 0.0
        %2271 = vmatpush1.msra.mxu0 0.0
        %2272 = vmatprep.subr.mxu0 0.0
        %2273 = vmatpush1.msra.mxu0 0.0
        %2274 = vmatprep.subr.mxu0 0.0
        %2275 = vmatpush1.msra.mxu0 0.0
        %2276 = vmatprep.subr.mxu0 0.0
        %2277 = vmatpush1.msra.mxu0 0.0
        %2278 = vmatprep.subr.mxu0 0.0
        %2279 = vmatpush1.msra.mxu0 0.0
        %2280 = vmatprep.subr.mxu0 0.0
        %2281 = vmatpush1.msra.mxu0 0.0
        %2282 = vmatprep.subr.mxu0 0.0
        %2283 = vmatpush1.msra.mxu0 0.0
        %2284 = vmatprep.subr.mxu0 0.0
        %2285 = vmatpush1.msra.mxu0 0.0
        %2286 = vmatprep.subr.mxu0 0.0
        %2287 = vmatpush1.msra.mxu0 0.0
        %2288 = vmatprep.subr.mxu0 0.0
        %2289 = vmatpush1.msra.mxu0 0.0
        %2290 = vmatprep.subr.mxu0 0.0
        %2291 = vmatpush1.msra.mxu0 0.0
        %2292 = vmatprep.subr.mxu0 0.0
        %2293 = vmatpush1.msra.mxu0 0.0
        %2294 = vmatprep.subr.mxu0 0.0
        %2295 = vmatpush1.msra.mxu0 0.0
        %2296 = vmatprep.subr.mxu0 0.0
        %2297 = vmatpush1.msra.mxu0 0.0
        %2298 = vmatprep.subr.mxu0 0.0
        %2299 = vmatpush1.msra.mxu0 0.0
        %2300 = vmatprep.subr.mxu0 0.0
        %2301 = vmatpush1.msra.mxu0 0.0
        %2302 = vmatprep.subr.mxu0 0.0
        %2303 = vmatpush1.msra.mxu0 0.0
        %2304 = vmatprep.subr.mxu0 0.0
        %2305 = vmatpush1.msra.mxu0 0.0
        %2306 = vmatprep.subr.mxu0 0.0
        %2307 = vmatpush1.msra.mxu0 0.0
        %2308 = vmatprep.subr.mxu0 0.0
        %2309 = vmatpush1.msra.mxu0 0.0
        %2310 = vmatprep.mubr.f32.mxu0 0.0
        %2311 = vmatmul.mubr.f32.gmra.mrb[0].mxu0 %v2244
        %v2312 = vpop.f32.mrb[0].mxu0
        %v2313 = vadd.f32 0.0, %v2312
        %v2314 = vpop.f32.mrb[0].mxu0
        %2315 = vdwg.mxu0
        %v2316 = vadd.f32 %v2167, %v2313
        %v2317 = vld [vmem:[%s9] sm:$0x1]
        %v2319 = vlaneseq
        %v2320 = vshrl.u32 %v2319, 7
        %v2321 = vsub.s32 0, %v2320
        %v2322 = vrot.slane %v2317, %v2321
        %v2324 = vadd.f32 %v2316, %v2322
        %2325 = vst.msk [vmem:[%s387] sm:$0xff] %vm417, %v2324
        %s2326 = sand.u32 %s262, 1
        %s2327 = scalar_lea.sflag [#allocation3], %s2326
        %s2328 = sand.u32 %s262, 1
        %s2329 = smul.addr %s2328, 8
        %s2330 = scalar_lea.vmem [#allocation2], %s2329
        // Predicated region
        $region61: #{tpu_custom_call.1} parent=59 // pred_check
          %p2331 = pneg %p272
        $region62: #{tpu_custom_call.1} parent=59 // pred_check_branch
          %2333 = sbr.rel (%p2331) target = $region64
        $region63: #{tpu_custom_call.1} parent=59 // pred_region
          %s2335 = ssub.s32 128, 128
          %2336 = vsyncadd %s2327, %s2335
          %s2337 = smul.addr %s24, 128
          %s2338 = scalar_lea.hbm %s10, %s2337
          %s2340 = sshll.u32 %s2330, 4
          %s2341 = int_to_ptr.vmem [resolvable:$true] %s2340
          %2343 = dma.vmem_to_hbm [thread:$0]  %s2341, 128, %s2338, %s2327
        $region64: #{tpu_custom_call.1} parent=59 // pred_fallthru
          _
      $region60: #{tpu_custom_call.1} parent=5 // pred_fallthru
        _
      %p2344 = scmp.le.s32.totalorder 2, %s19
      // Predicated region
      $region65: #{tpu_custom_call.1} parent=5 // pred_check
        %p2345 = pneg %p2344
      $region66: #{tpu_custom_call.1} parent=5 // pred_check_branch
        %2347 = sbr.rel (%p2345) target = $region68
      $region67: #{tpu_custom_call.1} parent=5 // pred_region
        %s2348 = ssub.s32 %s19, 2
        // Predicated region
        $region69: #{tpu_custom_call.1} parent=67 // pred_check
          %p2349 = pneg %p278
        $region70: #{tpu_custom_call.1} parent=67 // pred_check_branch
          %2351 = sbr.rel (%p2349) target = $region72
        $region71: #{tpu_custom_call.1} parent=67 // pred_region
          %s2352 = sand.u32 %s263, 1
          %s2353 = scalar_lea.sflag [#allocation3], %s2352
          %s2354 = sand.u32 %s263, 1
          %s2355 = smul.addr %s2354, 8
          %s2356 = scalar_lea.vmem [#allocation2], %s2355
          %2357 = dma.done %s2353, 128
        $region72: #{tpu_custom_call.1} parent=67 // pred_fallthru
          _
      $region68: #{tpu_custom_call.1} parent=5 // pred_fallthru
        _
    $region6: #{tpu_custom_call.1} parent=1 // loop_footer
      %s23 = sadd.s32 1, %s19
    $region7: #{tpu_custom_call.1} parent=1 // loop_footer_branch
      %18 = sbr.rel target = $region3
    $region8: #{tpu_custom_call.1} parent=1 // loop_exit
      _
    %2358 = vsyncpa [#allocation3], 1
    %s2359 = scalar_lea.sflag [#allocation3], 1
    %2360 = vsyncpa %s2359, 1

</llo_original>
